<compile_context>
chip_gen: v7x
topology: tpu7x:2x2x1
jax: 0.10.0
libtpu: 0.0.40
codegen_flags: <defaults>
</compile_context>

<pallas_src>
import math

import jax
import jax.numpy as jnp
import numpy as np
from jax import lax
from jax.experimental import pallas as pl
from jax.experimental.pallas import tpu as pltpu

# ---- problem sizes (small, consistent with the module) ----
B = 2            # batch
L = 16           # sequence length
D = 32           # d_model
H = 4            # attention heads
E = D // H       # head dim
FF = 64          # d_ff
MA_KERNEL = 25   # moving_avg kernel size (MSDEncoderLayer default)
BL = B * L


def _build_moving_avg_matrix(seq_len: int, kernel_size: int) -> np.ndarray:
    """Exact (L, L) linear operator for the PyTorch moving_avg block:
    replicate padding of (kernel-1)//2 on BOTH ends + AvgPool1d(kernel, stride=1)."""
    pad = (kernel_size - 1) // 2
    A = np.zeros((seq_len, seq_len), dtype=np.float32)
    for t in range(seq_len):
        for j in range(t, t + kernel_size):
            s = min(max(j - pad, 0), seq_len - 1)
            A[t, s] += 1.0 / kernel_size
    return A


def msd_encoder_layer_kernel(x_ref, wqkv_ref, wo_ref, avg_ref, w1_ref, w2_ref,
                             gate_ref, out_ref):
    x = x_ref[...]            # (BL, D)   flattened activations
    avg = avg_ref[...]        # (BL, BL)  block-diagonal moving-average operator

    # Fused q|k|v projection: one lane-dense (D, 3D) = (32, 96) MXU op.
    # The 1/sqrt(E) attention scale is folded into wq host-side.
    qkv = jnp.dot(x, wqkv_ref[...], preferred_element_type=jnp.float32)   # (BL, 3D)

    # Per-head column groups: one lane slice per head over the FULL batch rows;
    # per-batch pieces below are sublane slices (vreg sub-selection, ~free).
    q_h = [qkv[:, h * E:(h + 1) * E] for h in range(H)]
    k_h = [qkv[:, D + h * E:D + (h + 1) * E] for h in range(H)]
    v_h = [qkv[:, 2 * D + h * E:2 * D + (h + 1) * E] for h in range(H)]

    # Scores for every (batch, head), stacked along sublanes: rows ordered (b, h, l).
    s_blocks = []
    for b in range(B):
        r = slice(b * L, (b + 1) * L)
        for h in range(H):
            s_blocks.append(
                lax.dot_general(q_h[h][r, :], k_h[h][r, :],
                                (((1,), (1,)), ((), ())),
                                preferred_element_type=jnp.float32))      # (L, L)
    s_all = jnp.concatenate(s_blocks, axis=0)                             # (B*H*L, L)

    # ONE batched softmax for all heads / batches (single max/exp/sum/recip chain).
    m = jnp.max(s_all, axis=-1, keepdims=True)
    p = jnp.exp(s_all - m)
    denom = jnp.sum(p, axis=-1, keepdims=True)
    # TODO(synk): approx=True moves this onto the EUP; kept exact to hold the 1e-4 attn tol.
    probs_all = p * pl.reciprocal(denom, approx=False)                    # (B*H*L, L)

    # Slice each (b, h) probability block once; reuse for probs@V and the attn output.
    pb = [[probs_all[(b * H + h) * L:(b * H + h + 1) * L, :] for h in range(H)]
          for b in range(B)]

    # probs @ V assembled entirely in registers (no VMEM scratch), then ONE o @ wo.
    o_rows = []
    for b in range(B):
        r = slice(b * L, (b + 1) * L)
        o_rows.append(jnp.concatenate(
            [jnp.dot(pb[b][h], v_h[h][r, :], preferred_element_type=jnp.float32)
             for h in range(H)], axis=1))                                  # (L, D)
    o = jnp.concatenate(o_rows, axis=0)                                    # (BL, D)
    new_x = jnp.dot(o, wo_ref[...], preferred_element_type=jnp.float32)    # (BL, D)

    # attn laid out lane-dense for the packed output slab: row (b,l), col (h,s).
    attn_cols = jnp.concatenate(
        [jnp.concatenate(pb[b], axis=1) for b in range(B)], axis=0)        # (BL, H*L)

    # ---- x = x + dropout(new_x) (eval: identity); decomp1 ----
    x1 = x + new_x
    trend1 = jnp.dot(avg, x1, preferred_element_type=jnp.float32)
    s1 = x1 - trend1

    # ---- pointwise FFN: conv1(k=1) -> relu -> conv2(k=1) (dropout = identity) ----
    y = jnp.maximum(jnp.dot(s1, w1_ref[...], preferred_element_type=jnp.float32), 0.0)
    y = jnp.dot(y, w2_ref[...], preferred_element_type=jnp.float32)

    # ---- decomp2 on (x + y) ----
    z = s1 + y
    trend2 = jnp.dot(avg, z, preferred_element_type=jnp.float32)
    res = z - trend2

    # ---- trend mixing: 2-way softmax over Linear(1,2)(trend1) == one sigmoid gate ----
    dw = gate_ref[0]                                      # (w1 - w0)  from SMEM
    db = gate_ref[1]                                      # (b1 - b0)  from SMEM
    g = 1.0 / (1.0 + jnp.exp(-(trend1 * dw + db)))        # weight of trend2
    trend = trend1 + (trend2 - trend1) * g

    # Single full-width, lane-dense (BL, 128) store: [res | trend | attn].
    out_ref[...] = jnp.concatenate([res, trend, attn_cols], axis=1)


def msd_encoder_layer(x, params):
    wq, wk, wv, wo, w1, w2, wl, bl = params

    # host-side packing: fold 1/sqrt(E) into wq; pack q|k|v projections into one slab
    scale = 1.0 / math.sqrt(E)
    w_qkv = jnp.concatenate([wq * scale, wk, wv], axis=1).astype(jnp.float32)  # (D, 96)
    wo = wo.astype(jnp.float32)
    # softmax([w0*t+b0, w1*t+b1])[1] == sigmoid((w1-w0)*t + (b1-b0))
    gate = jnp.stack([wl[0, 1] - wl[0, 0], bl[0, 1] - bl[0, 0]]).astype(jnp.float32)  # (2,)
    avg1 = _build_moving_avg_matrix(L, MA_KERNEL)
    avg = jnp.asarray(np.kron(np.eye(B, dtype=np.float32), avg1))  # (BL, BL) block-diag

    x_flat = x.reshape(BL, D).astype(jnp.float32)

    # advisory cost estimate for XLA's scheduler
    flops = (2 * BL * D * (3 * D)              # fused qkv projection
             + 2 * B * H * 2 * L * L * E       # scores + probs @ v
             + 2 * BL * D * D                  # output projection
             + 2 * 2 * BL * BL * D             # two moving-average applications
             + 2 * 2 * BL * D * FF)            # FFN conv1 + conv2
    transcendentals = B * H * L * L + BL * D   # softmax exps + sigmoid gate
    bytes_accessed = 4 * (BL * D + D * 3 * D + D * D + BL * BL
                          + D * FF + FF * D + 2 + BL * (2 * D + H * L))

    out_slab = pl.pallas_call(
        msd_encoder_layer_kernel,
        out_shape=jax.ShapeDtypeStruct((BL, 2 * D + H * L), jnp.float32),  # (32, 128)
        grid_spec=pltpu.PrefetchScalarGridSpec(
            num_scalar_prefetch=0,
            grid=(1,),
            in_specs=[
                pl.BlockSpec((BL, D), lambda g: (0, 0)),              # x (flattened)
                pl.BlockSpec((D, 3 * D), lambda g: (0, 0)),           # packed q|k|v weights
                pl.BlockSpec((D, D), lambda g: (0, 0)),               # wo
                pl.BlockSpec((BL, BL), lambda g: (0, 0)),             # moving-average op
                pl.BlockSpec((D, FF), lambda g: (0, 0)),              # conv1 (k=1)
                pl.BlockSpec((FF, D), lambda g: (0, 0)),              # conv2 (k=1)
                pl.BlockSpec(memory_space=pltpu.MemorySpace.SMEM),    # 2 gate scalars
            ],
            out_specs=pl.BlockSpec((BL, 2 * D + H * L), lambda g: (0, 0)),
        ),
        compiler_params=pltpu.CompilerParams(dimension_semantics=("arbitrary",)),
        cost_estimate=pl.CostEstimate(flops=flops,
                                      transcendentals=transcendentals,
                                      bytes_accessed=bytes_accessed),
    )(x_flat, w_qkv, wo, avg, w1, w2, gate)

    res = out_slab[:, :D].reshape(B, L, D)
    x_trend = out_slab[:, D:2 * D].reshape(B, L, D)
    attn = out_slab[:, 2 * D:].reshape(B, L, H, L).transpose(0, 2, 1, 3)   # (B, H, L, L)
    return res, x_trend, attn


def ref_forward(x, params):
    """Pure-JAX reference of the same forward pass (unpacked weights, plain softmax)."""
    wq, wk, wv, wo, w1, w2, wl, bl = params
    scale = 1.0 / math.sqrt(E)
    q = x @ wq
    k = x @ wk
    v = x @ wv
    qh = q.reshape(B, L, H, E).transpose(0, 2, 1, 3)
    kh = k.reshape(B, L, H, E).transpose(0, 2, 1, 3)
    vh = v.reshape(B, L, H, E).transpose(0, 2, 1, 3)
    scores = jnp.einsum("bhle,bhse->bhls", qh, kh) * scale
    probs = jax.nn.softmax(scores, axis=-1)
    o = jnp.einsum("bhls,bhse->bhle", probs, vh).transpose(0, 2, 1, 3).reshape(B, L, D)
    new_x = o @ wo
    x1 = x + new_x
    avg = jnp.asarray(_build_moving_avg_matrix(L, MA_KERNEL))
    trend1 = jnp.einsum("ts,bsd->btd", avg, x1)
    s1 = x1 - trend1
    y = jnp.maximum(s1 @ w1, 0.0) @ w2
    z = s1 + y
    trend2 = jnp.einsum("ts,bsd->btd", avg, z)
    res = z - trend2
    logits = trend1[..., None] * wl[0][None, None, None, :] + bl[0][None, None, None, :]
    smax = jax.nn.softmax(logits, axis=-1)
    x_trend = trend1 * smax[..., 0] + trend2 * smax[..., 1]
    return res, x_trend, probs


if __name__ == "__main__":
    key = jax.random.PRNGKey(0)
    keys = jax.random.split(key, 10)
    x = jax.random.normal(keys[0], (B, L, D), dtype=jnp.float32)

    # Deterministic synthetic parameters (shapes from MSDEncoderLayer.__init__)
    wq = 0.1 * jax.random.normal(keys[1], (D, D), dtype=jnp.float32)
    wk = 0.1 * jax.random.normal(keys[2], (D, D), dtype=jnp.float32)
    wv = 0.1 * jax.random.normal(keys[3], (D, D), dtype=jnp.float32)
    wo = 0.1 * jax.random.normal(keys[4], (D, D), dtype=jnp.float32)
    w1 = 0.1 * jax.random.normal(keys[5], (D, FF), dtype=jnp.float32)   # conv1 (k=1), no bias
    w2 = 0.1 * jax.random.normal(keys[6], (FF, D), dtype=jnp.float32)   # conv2 (k=1), no bias
    wl = 0.5 * jax.random.normal(keys[7], (1, 2), dtype=jnp.float32)    # Linear(1, 2).weight.T
    bl = 0.1 * jax.random.normal(keys[8], (1, 2), dtype=jnp.float32)    # Linear(1, 2).bias

    params = (wq, wk, wv, wo, w1, w2, wl, bl)

    res, x_trend, attn = jax.block_until_ready(msd_encoder_layer(x, params))
    res_r, trend_r, attn_r = ref_forward(x, params)

    assert res.shape == (B, L, D) and x_trend.shape == (B, L, D) and attn.shape == (B, H, L, L)
    np.testing.assert_allclose(np.asarray(res), np.asarray(res_r), rtol=1e-4, atol=1e-4)
    np.testing.assert_allclose(np.asarray(x_trend), np.asarray(trend_r), rtol=1e-4, atol=1e-4)
    np.testing.assert_allclose(np.asarray(attn), np.asarray(attn_r), rtol=1e-4, atol=1e-4)
    print("KERNEL_OK")
</pallas_src>

<mosaic_0001>
module attributes {stable_mosaic.version = 11 : i64} {
  func.func @msd_encoder_layer_kernel(%arg0: i32, %arg1: memref<32x32xf32, #tpu.memory_space<vmem>>, %arg2: memref<32x96xf32, #tpu.memory_space<vmem>>, %arg3: memref<32x32xf32, #tpu.memory_space<vmem>>, %arg4: memref<32x32xf32, #tpu.memory_space<vmem>>, %arg5: memref<32x64xf32, #tpu.memory_space<vmem>>, %arg6: memref<64x32xf32, #tpu.memory_space<vmem>>, %arg7: memref<2xf32, #tpu.memory_space<smem>>, %arg8: memref<32x128xf32, #tpu.memory_space<vmem>>) attributes {dimension_semantics = [#tpu.dimension_semantics<arbitrary>], iteration_bounds = array<i64: 1>, scalar_prefetch = 0 : i64, scratch_operands = 0 : i64, tpu.core_type = #tpu.core_type<tc>, window_params = [{pipeline_mode = #tpu.pipeline_mode<synchronous>, transform_indices = @transform_0, window_bounds = array<i64: 32, 32>}, {pipeline_mode = #tpu.pipeline_mode<synchronous>, transform_indices = @transform_1, window_bounds = array<i64: 32, 96>}, {pipeline_mode = #tpu.pipeline_mode<synchronous>, transform_indices = @transform_2, window_bounds = array<i64: 32, 32>}, {pipeline_mode = #tpu.pipeline_mode<synchronous>, transform_indices = @transform_3, window_bounds = array<i64: 32, 32>}, {pipeline_mode = #tpu.pipeline_mode<synchronous>, transform_indices = @transform_4, window_bounds = array<i64: 32, 64>}, {pipeline_mode = #tpu.pipeline_mode<synchronous>, transform_indices = @transform_5, window_bounds = array<i64: 64, 32>}, {transform_indices = @transform_6, window_bounds = array<i64: 2>}, {pipeline_mode = #tpu.pipeline_mode<synchronous>, transform_indices = @transform_7, window_bounds = array<i64: 32, 128>}]} {
    %c0 = arith.constant 0 : index
    %c0_0 = arith.constant 0 : index
    %0 = vector.load %arg1[%c0, %c0_0] : memref<32x32xf32, #tpu.memory_space<vmem>>, vector<32x32xf32>
    %c0_1 = arith.constant 0 : index
    %c0_2 = arith.constant 0 : index
    %1 = vector.load %arg4[%c0_1, %c0_2] : memref<32x32xf32, #tpu.memory_space<vmem>>, vector<32x32xf32>
    %c0_3 = arith.constant 0 : index
    %c0_4 = arith.constant 0 : index
    %2 = vector.load %arg2[%c0_3, %c0_4] : memref<32x96xf32, #tpu.memory_space<vmem>>, vector<32x96xf32>
    %cst = arith.constant dense<0.000000e+00> : vector<32x96xf32>
    %3 = tpu.matmul %0, %2, %cst {dimension_numbers = #tpu.dot_dimension_numbers<[1], [0], [0], [1], [0, 0, 1, 1], [], []>} : vector<32x32xf32>, vector<32x96xf32>, vector<32x96xf32> -> vector<32x96xf32>
    %4 = vector.extract_strided_slice %3 {offsets = [0, 0], sizes = [32, 8], strides = [1, 1]} : vector<32x96xf32> to vector<32x8xf32>
    %5 = vector.extract_strided_slice %3 {offsets = [0, 8], sizes = [32, 8], strides = [1, 1]} : vector<32x96xf32> to vector<32x8xf32>
    %6 = vector.extract_strided_slice %3 {offsets = [0, 16], sizes = [32, 8], strides = [1, 1]} : vector<32x96xf32> to vector<32x8xf32>
    %7 = vector.extract_strided_slice %3 {offsets = [0, 24], sizes = [32, 8], strides = [1, 1]} : vector<32x96xf32> to vector<32x8xf32>
    %8 = vector.extract_strided_slice %3 {offsets = [0, 32], sizes = [32, 8], strides = [1, 1]} : vector<32x96xf32> to vector<32x8xf32>
    %9 = vector.extract_strided_slice %3 {offsets = [0, 40], sizes = [32, 8], strides = [1, 1]} : vector<32x96xf32> to vector<32x8xf32>
    %10 = vector.extract_strided_slice %3 {offsets = [0, 48], sizes = [32, 8], strides = [1, 1]} : vector<32x96xf32> to vector<32x8xf32>
    %11 = vector.extract_strided_slice %3 {offsets = [0, 56], sizes = [32, 8], strides = [1, 1]} : vector<32x96xf32> to vector<32x8xf32>
    %12 = vector.extract_strided_slice %3 {offsets = [0, 64], sizes = [32, 8], strides = [1, 1]} : vector<32x96xf32> to vector<32x8xf32>
    %13 = vector.extract_strided_slice %3 {offsets = [0, 72], sizes = [32, 8], strides = [1, 1]} : vector<32x96xf32> to vector<32x8xf32>
    %14 = vector.extract_strided_slice %3 {offsets = [0, 80], sizes = [32, 8], strides = [1, 1]} : vector<32x96xf32> to vector<32x8xf32>
    %15 = vector.extract_strided_slice %3 {offsets = [0, 88], sizes = [32, 8], strides = [1, 1]} : vector<32x96xf32> to vector<32x8xf32>
    %16 = vector.extract_strided_slice %4 {offsets = [0, 0], sizes = [16, 8], strides = [1, 1]} : vector<32x8xf32> to vector<16x8xf32>
    %17 = vector.extract_strided_slice %8 {offsets = [0, 0], sizes = [16, 8], strides = [1, 1]} : vector<32x8xf32> to vector<16x8xf32>
    %cst_5 = arith.constant dense<0.000000e+00> : vector<16x16xf32>
    %18 = tpu.matmul %16, %17, %cst_5 {dimension_numbers = #tpu.dot_dimension_numbers<[1], [1], [0], [0], [0, 0, 1, 0], [], []>} : vector<16x8xf32>, vector<16x8xf32>, vector<16x16xf32> -> vector<16x16xf32>
    %19 = vector.extract_strided_slice %5 {offsets = [0, 0], sizes = [16, 8], strides = [1, 1]} : vector<32x8xf32> to vector<16x8xf32>
    %20 = vector.extract_strided_slice %9 {offsets = [0, 0], sizes = [16, 8], strides = [1, 1]} : vector<32x8xf32> to vector<16x8xf32>
    %cst_6 = arith.constant dense<0.000000e+00> : vector<16x16xf32>
    %21 = tpu.matmul %19, %20, %cst_6 {dimension_numbers = #tpu.dot_dimension_numbers<[1], [1], [0], [0], [0, 0, 1, 0], [], []>} : vector<16x8xf32>, vector<16x8xf32>, vector<16x16xf32> -> vector<16x16xf32>
    %22 = vector.extract_strided_slice %6 {offsets = [0, 0], sizes = [16, 8], strides = [1, 1]} : vector<32x8xf32> to vector<16x8xf32>
    %23 = vector.extract_strided_slice %10 {offsets = [0, 0], sizes = [16, 8], strides = [1, 1]} : vector<32x8xf32> to vector<16x8xf32>
    %cst_7 = arith.constant dense<0.000000e+00> : vector<16x16xf32>
    %24 = tpu.matmul %22, %23, %cst_7 {dimension_numbers = #tpu.dot_dimension_numbers<[1], [1], [0], [0], [0, 0, 1, 0], [], []>} : vector<16x8xf32>, vector<16x8xf32>, vector<16x16xf32> -> vector<16x16xf32>
    %25 = vector.extract_strided_slice %7 {offsets = [0, 0], sizes = [16, 8], strides = [1, 1]} : vector<32x8xf32> to vector<16x8xf32>
    %26 = vector.extract_strided_slice %11 {offsets = [0, 0], sizes = [16, 8], strides = [1, 1]} : vector<32x8xf32> to vector<16x8xf32>
    %cst_8 = arith.constant dense<0.000000e+00> : vector<16x16xf32>
    %27 = tpu.matmul %25, %26, %cst_8 {dimension_numbers = #tpu.dot_dimension_numbers<[1], [1], [0], [0], [0, 0, 1, 0], [], []>} : vector<16x8xf32>, vector<16x8xf32>, vector<16x16xf32> -> vector<16x16xf32>
    %28 = vector.extract_strided_slice %4 {offsets = [16, 0], sizes = [16, 8], strides = [1, 1]} : vector<32x8xf32> to vector<16x8xf32>
    %29 = vector.extract_strided_slice %8 {offsets = [16, 0], sizes = [16, 8], strides = [1, 1]} : vector<32x8xf32> to vector<16x8xf32>
    %cst_9 = arith.constant dense<0.000000e+00> : vector<16x16xf32>
    %30 = tpu.matmul %28, %29, %cst_9 {dimension_numbers = #tpu.dot_dimension_numbers<[1], [1], [0], [0], [0, 0, 1, 0], [], []>} : vector<16x8xf32>, vector<16x8xf32>, vector<16x16xf32> -> vector<16x16xf32>
    %31 = vector.extract_strided_slice %5 {offsets = [16, 0], sizes = [16, 8], strides = [1, 1]} : vector<32x8xf32> to vector<16x8xf32>
    %32 = vector.extract_strided_slice %9 {offsets = [16, 0], sizes = [16, 8], strides = [1, 1]} : vector<32x8xf32> to vector<16x8xf32>
    %cst_10 = arith.constant dense<0.000000e+00> : vector<16x16xf32>
    %33 = tpu.matmul %31, %32, %cst_10 {dimension_numbers = #tpu.dot_dimension_numbers<[1], [1], [0], [0], [0, 0, 1, 0], [], []>} : vector<16x8xf32>, vector<16x8xf32>, vector<16x16xf32> -> vector<16x16xf32>
    %34 = vector.extract_strided_slice %6 {offsets = [16, 0], sizes = [16, 8], strides = [1, 1]} : vector<32x8xf32> to vector<16x8xf32>
    %35 = vector.extract_strided_slice %10 {offsets = [16, 0], sizes = [16, 8], strides = [1, 1]} : vector<32x8xf32> to vector<16x8xf32>
    %cst_11 = arith.constant dense<0.000000e+00> : vector<16x16xf32>
    %36 = tpu.matmul %34, %35, %cst_11 {dimension_numbers = #tpu.dot_dimension_numbers<[1], [1], [0], [0], [0, 0, 1, 0], [], []>} : vector<16x8xf32>, vector<16x8xf32>, vector<16x16xf32> -> vector<16x16xf32>
    %37 = vector.extract_strided_slice %7 {offsets = [16, 0], sizes = [16, 8], strides = [1, 1]} : vector<32x8xf32> to vector<16x8xf32>
    %38 = vector.extract_strided_slice %11 {offsets = [16, 0], sizes = [16, 8], strides = [1, 1]} : vector<32x8xf32> to vector<16x8xf32>
    %cst_12 = arith.constant dense<0.000000e+00> : vector<16x16xf32>
    %39 = tpu.matmul %37, %38, %cst_12 {dimension_numbers = #tpu.dot_dimension_numbers<[1], [1], [0], [0], [0, 0, 1, 0], [], []>} : vector<16x8xf32>, vector<16x8xf32>, vector<16x16xf32> -> vector<16x16xf32>
    %40 = tpu.concatenate %18, %21, %24, %27, %30, %33, %36, %39 in 0 : vector<16x16xf32>, vector<16x16xf32>, vector<16x16xf32>, vector<16x16xf32>, vector<16x16xf32>, vector<16x16xf32>, vector<16x16xf32>, vector<16x16xf32> -> vector<128x16xf32>
    %cst_13 = arith.constant dense<0xFF800000> : vector<128xf32>
    %41 = vector.multi_reduction <maximumf>, %40, %cst_13 [1] : vector<128x16xf32> to vector<128xf32>
    %42 = vector.shape_cast %41 : vector<128xf32> to vector<128x1xf32>
    %43 = vector.broadcast %42 : vector<128x1xf32> to vector<128x16xf32>
    %44 = arith.subf %40, %43 : vector<128x16xf32>
    %45 = math.exp %44 : vector<128x16xf32>
    %cst_14 = arith.constant dense<0.000000e+00> : vector<128xf32>
    %46 = vector.multi_reduction <add>, %45, %cst_14 [1] : vector<128x16xf32> to vector<128xf32>
    %47 = vector.shape_cast %46 : vector<128xf32> to vector<128x1xf32>
    %48 = tpu.reciprocal %47 : vector<128x1xf32> -> vector<128x1xf32>
    %49 = vector.broadcast %48 : vector<128x1xf32> to vector<128x16xf32>
    %50 = arith.mulf %45, %49 : vector<128x16xf32>
    %51 = vector.extract_strided_slice %50 {offsets = [0, 0], sizes = [16, 16], strides = [1, 1]} : vector<128x16xf32> to vector<16x16xf32>
    %52 = vector.extract_strided_slice %50 {offsets = [16, 0], sizes = [16, 16], strides = [1, 1]} : vector<128x16xf32> to vector<16x16xf32>
    %53 = vector.extract_strided_slice %50 {offsets = [32, 0], sizes = [16, 16], strides = [1, 1]} : vector<128x16xf32> to vector<16x16xf32>
    %54 = vector.extract_strided_slice %50 {offsets = [48, 0], sizes = [16, 16], strides = [1, 1]} : vector<128x16xf32> to vector<16x16xf32>
    %55 = vector.extract_strided_slice %50 {offsets = [64, 0], sizes = [16, 16], strides = [1, 1]} : vector<128x16xf32> to vector<16x16xf32>
    %56 = vector.extract_strided_slice %50 {offsets = [80, 0], sizes = [16, 16], strides = [1, 1]} : vector<128x16xf32> to vector<16x16xf32>
    %57 = vector.extract_strided_slice %50 {offsets = [96, 0], sizes = [16, 16], strides = [1, 1]} : vector<128x16xf32> to vector<16x16xf32>
    %58 = vector.extract_strided_slice %50 {offsets = [112, 0], sizes = [16, 16], strides = [1, 1]} : vector<128x16xf32> to vector<16x16xf32>
    %59 = vector.extract_strided_slice %12 {offsets = [0, 0], sizes = [16, 8], strides = [1, 1]} : vector<32x8xf32> to vector<16x8xf32>
    %cst_15 = arith.constant dense<0.000000e+00> : vector<16x8xf32>
    %60 = tpu.matmul %51, %59, %cst_15 {dimension_numbers = #tpu.dot_dimension_numbers<[1], [0], [0], [1], [0, 0, 1, 1], [], []>} : vector<16x16xf32>, vector<16x8xf32>, vector<16x8xf32> -> vector<16x8xf32>
    %61 = vector.extract_strided_slice %13 {offsets = [0, 0], sizes = [16, 8], strides = [1, 1]} : vector<32x8xf32> to vector<16x8xf32>
    %cst_16 = arith.constant dense<0.000000e+00> : vector<16x8xf32>
    %62 = tpu.matmul %52, %61, %cst_16 {dimension_numbers = #tpu.dot_dimension_numbers<[1], [0], [0], [1], [0, 0, 1, 1], [], []>} : vector<16x16xf32>, vector<16x8xf32>, vector<16x8xf32> -> vector<16x8xf32>
    %63 = vector.extract_strided_slice %14 {offsets = [0, 0], sizes = [16, 8], strides = [1, 1]} : vector<32x8xf32> to vector<16x8xf32>
    %cst_17 = arith.constant dense<0.000000e+00> : vector<16x8xf32>
    %64 = tpu.matmul %53, %63, %cst_17 {dimension_numbers = #tpu.dot_dimension_numbers<[1], [0], [0], [1], [0, 0, 1, 1], [], []>} : vector<16x16xf32>, vector<16x8xf32>, vector<16x8xf32> -> vector<16x8xf32>
    %65 = vector.extract_strided_slice %15 {offsets = [0, 0], sizes = [16, 8], strides = [1, 1]} : vector<32x8xf32> to vector<16x8xf32>
    %cst_18 = arith.constant dense<0.000000e+00> : vector<16x8xf32>
    %66 = tpu.matmul %54, %65, %cst_18 {dimension_numbers = #tpu.dot_dimension_numbers<[1], [0], [0], [1], [0, 0, 1, 1], [], []>} : vector<16x16xf32>, vector<16x8xf32>, vector<16x8xf32> -> vector<16x8xf32>
    %67 = tpu.concatenate %60, %62, %64, %66 in 1 : vector<16x8xf32>, vector<16x8xf32>, vector<16x8xf32>, vector<16x8xf32> -> vector<16x32xf32>
    %68 = vector.extract_strided_slice %12 {offsets = [16, 0], sizes = [16, 8], strides = [1, 1]} : vector<32x8xf32> to vector<16x8xf32>
    %cst_19 = arith.constant dense<0.000000e+00> : vector<16x8xf32>
    %69 = tpu.matmul %55, %68, %cst_19 {dimension_numbers = #tpu.dot_dimension_numbers<[1], [0], [0], [1], [0, 0, 1, 1], [], []>} : vector<16x16xf32>, vector<16x8xf32>, vector<16x8xf32> -> vector<16x8xf32>
    %70 = vector.extract_strided_slice %13 {offsets = [16, 0], sizes = [16, 8], strides = [1, 1]} : vector<32x8xf32> to vector<16x8xf32>
    %cst_20 = arith.constant dense<0.000000e+00> : vector<16x8xf32>
    %71 = tpu.matmul %56, %70, %cst_20 {dimension_numbers = #tpu.dot_dimension_numbers<[1], [0], [0], [1], [0, 0, 1, 1], [], []>} : vector<16x16xf32>, vector<16x8xf32>, vector<16x8xf32> -> vector<16x8xf32>
    %72 = vector.extract_strided_slice %14 {offsets = [16, 0], sizes = [16, 8], strides = [1, 1]} : vector<32x8xf32> to vector<16x8xf32>
    %cst_21 = arith.constant dense<0.000000e+00> : vector<16x8xf32>
    %73 = tpu.matmul %57, %72, %cst_21 {dimension_numbers = #tpu.dot_dimension_numbers<[1], [0], [0], [1], [0, 0, 1, 1], [], []>} : vector<16x16xf32>, vector<16x8xf32>, vector<16x8xf32> -> vector<16x8xf32>
    %74 = vector.extract_strided_slice %15 {offsets = [16, 0], sizes = [16, 8], strides = [1, 1]} : vector<32x8xf32> to vector<16x8xf32>
    %cst_22 = arith.constant dense<0.000000e+00> : vector<16x8xf32>
    %75 = tpu.matmul %58, %74, %cst_22 {dimension_numbers = #tpu.dot_dimension_numbers<[1], [0], [0], [1], [0, 0, 1, 1], [], []>} : vector<16x16xf32>, vector<16x8xf32>, vector<16x8xf32> -> vector<16x8xf32>
    %76 = tpu.concatenate %69, %71, %73, %75 in 1 : vector<16x8xf32>, vector<16x8xf32>, vector<16x8xf32>, vector<16x8xf32> -> vector<16x32xf32>
    %77 = tpu.concatenate %67, %76 in 0 : vector<16x32xf32>, vector<16x32xf32> -> vector<32x32xf32>
    %c0_23 = arith.constant 0 : index
    %c0_24 = arith.constant 0 : index
    %78 = vector.load %arg3[%c0_23, %c0_24] : memref<32x32xf32, #tpu.memory_space<vmem>>, vector<32x32xf32>
    %cst_25 = arith.constant dense<0.000000e+00> : vector<32x32xf32>
    %79 = tpu.matmul %77, %78, %cst_25 {dimension_numbers = #tpu.dot_dimension_numbers<[1], [0], [0], [1], [0, 0, 1, 1], [], []>} : vector<32x32xf32>, vector<32x32xf32>, vector<32x32xf32> -> vector<32x32xf32>
    %80 = tpu.concatenate %51, %52, %53, %54 in 1 : vector<16x16xf32>, vector<16x16xf32>, vector<16x16xf32>, vector<16x16xf32> -> vector<16x64xf32>
    %81 = tpu.concatenate %55, %56, %57, %58 in 1 : vector<16x16xf32>, vector<16x16xf32>, vector<16x16xf32>, vector<16x16xf32> -> vector<16x64xf32>
    %82 = tpu.concatenate %80, %81 in 0 : vector<16x64xf32>, vector<16x64xf32> -> vector<32x64xf32>
    %83 = arith.addf %0, %79 : vector<32x32xf32>
    %cst_26 = arith.constant dense<0.000000e+00> : vector<32x32xf32>
    %84 = tpu.matmul %1, %83, %cst_26 {dimension_numbers = #tpu.dot_dimension_numbers<[1], [0], [0], [1], [0, 0, 1, 1], [], []>} : vector<32x32xf32>, vector<32x32xf32>, vector<32x32xf32> -> vector<32x32xf32>
    %85 = arith.subf %83, %84 : vector<32x32xf32>
    %c0_27 = arith.constant 0 : index
    %c0_28 = arith.constant 0 : index
    %86 = vector.load %arg5[%c0_27, %c0_28] : memref<32x64xf32, #tpu.memory_space<vmem>>, vector<32x64xf32>
    %cst_29 = arith.constant dense<0.000000e+00> : vector<32x64xf32>
    %87 = tpu.matmul %85, %86, %cst_29 {dimension_numbers = #tpu.dot_dimension_numbers<[1], [0], [0], [1], [0, 0, 1, 1], [], []>} : vector<32x32xf32>, vector<32x64xf32>, vector<32x64xf32> -> vector<32x64xf32>
    %cst_30 = arith.constant 0.000000e+00 : f32
    %88 = vector.broadcast %cst_30 : f32 to vector<32x64xf32>
    %89 = arith.maximumf %87, %88 : vector<32x64xf32>
    %c0_31 = arith.constant 0 : index
    %c0_32 = arith.constant 0 : index
    %90 = vector.load %arg6[%c0_31, %c0_32] : memref<64x32xf32, #tpu.memory_space<vmem>>, vector<64x32xf32>
    %cst_33 = arith.constant dense<0.000000e+00> : vector<32x32xf32>
    %91 = tpu.matmul %89, %90, %cst_33 {dimension_numbers = #tpu.dot_dimension_numbers<[1], [0], [0], [1], [0, 0, 1, 1], [], []>} : vector<32x64xf32>, vector<64x32xf32>, vector<32x32xf32> -> vector<32x32xf32>
    %92 = arith.addf %85, %91 : vector<32x32xf32>
    %cst_34 = arith.constant dense<0.000000e+00> : vector<32x32xf32>
    %93 = tpu.matmul %1, %92, %cst_34 {dimension_numbers = #tpu.dot_dimension_numbers<[1], [0], [0], [1], [0, 0, 1, 1], [], []>} : vector<32x32xf32>, vector<32x32xf32>, vector<32x32xf32> -> vector<32x32xf32>
    %94 = arith.subf %92, %93 : vector<32x32xf32>
    %c0_35 = arith.constant 0 : index
    %95 = memref.load %arg7[%c0_35] : memref<2xf32, #tpu.memory_space<smem>>
    %c1 = arith.constant 1 : index
    %96 = memref.load %arg7[%c1] : memref<2xf32, #tpu.memory_space<smem>>
    %97 = vector.broadcast %95 : f32 to vector<32x32xf32>
    %98 = arith.mulf %84, %97 : vector<32x32xf32>
    %99 = vector.broadcast %96 : f32 to vector<32x32xf32>
    %100 = arith.addf %98, %99 : vector<32x32xf32>
    %cst_36 = arith.constant 0.000000e+00 : f32
    %101 = vector.broadcast %cst_36 : f32 to vector<32x32xf32>
    %102 = arith.subf %101, %100 : vector<32x32xf32>
    %103 = math.exp %102 : vector<32x32xf32>
    %cst_37 = arith.constant 1.000000e+00 : f32
    %104 = vector.broadcast %cst_37 : f32 to vector<32x32xf32>
    %105 = arith.addf %104, %103 : vector<32x32xf32>
    %cst_38 = arith.constant 1.000000e+00 : f32
    %106 = vector.broadcast %cst_38 : f32 to vector<32x32xf32>
    %107 = arith.divf %106, %105 : vector<32x32xf32>
    %108 = arith.subf %93, %84 : vector<32x32xf32>
    %109 = arith.mulf %108, %107 : vector<32x32xf32>
    %110 = arith.addf %84, %109 : vector<32x32xf32>
    %111 = tpu.concatenate %94, %110, %82 in 1 : vector<32x32xf32>, vector<32x32xf32>, vector<32x64xf32> -> vector<32x128xf32>
    %c0_39 = arith.constant 0 : index
    %c0_40 = arith.constant 0 : index
    %112 = vector.load %arg8[%c0_39, %c0_40] : memref<32x128xf32, #tpu.memory_space<vmem>>, vector<32x128xf32>
    tpu.vector_store %arg8[%c0_39, %c0_40], %111 {strides = array<i32>} : memref<32x128xf32, #tpu.memory_space<vmem>>, vector<32x128xf32>,
    return
  }
  func.func @transform_0(%arg0: i32) -> (i32, i32) {
    %c0_i32 = arith.constant 0 : i32
    %c0_i32_0 = arith.constant 0 : i32
    %c0_i32_1 = arith.constant 0 : i32
    return %c0_i32, %c0_i32_0 : i32, i32
  }
  func.func @transform_1(%arg0: i32) -> (i32, i32) {
    %c0_i32 = arith.constant 0 : i32
    %c0_i32_0 = arith.constant 0 : i32
    %c0_i32_1 = arith.constant 0 : i32
    return %c0_i32, %c0_i32_0 : i32, i32
  }
  func.func @transform_2(%arg0: i32) -> (i32, i32) {
    %c0_i32 = arith.constant 0 : i32
    %c0_i32_0 = arith.constant 0 : i32
    %c0_i32_1 = arith.constant 0 : i32
    return %c0_i32, %c0_i32_0 : i32, i32
  }
  func.func @transform_3(%arg0: i32) -> (i32, i32) {
    %c0_i32 = arith.constant 0 : i32
    %c0_i32_0 = arith.constant 0 : i32
    %c0_i32_1 = arith.constant 0 : i32
    return %c0_i32, %c0_i32_0 : i32, i32
  }
  func.func @transform_4(%arg0: i32) -> (i32, i32) {
    %c0_i32 = arith.constant 0 : i32
    %c0_i32_0 = arith.constant 0 : i32
    %c0_i32_1 = arith.constant 0 : i32
    return %c0_i32, %c0_i32_0 : i32, i32
  }
  func.func @transform_5(%arg0: i32) -> (i32, i32) {
    %c0_i32 = arith.constant 0 : i32
    %c0_i32_0 = arith.constant 0 : i32
    %c0_i32_1 = arith.constant 0 : i32
    return %c0_i32, %c0_i32_0 : i32, i32
  }
  func.func @transform_6(%arg0: i32) -> i32 {
    %c0_i32 = arith.constant 0 : i32
    %c0_i32_0 = arith.constant 0 : i32
    return %c0_i32 : i32
  }
  func.func @transform_7(%arg0: i32) -> (i32, i32) {
    %c0_i32 = arith.constant 0 : i32
    %c0_i32_0 = arith.constant 0 : i32
    %c0_i32_1 = arith.constant 0 : i32
    return %c0_i32, %c0_i32_0 : i32, i32
  }
}

</mosaic_0001>

<llo_original>
// kernel: tpu_custom_call.1
$region0: #{tpu_custom_call.1}
  #allocation0 [shape = 'u32[]', space=smem, size = 0x4, offset = 0x4, fixed_abs, tag = 'smem constant byte address 0x4 - core index']
  #allocation1 [shape = 'u32[144,128]{1,0:T(1,128)}', space=vmem, size = 0x12000, scoped, tag = 'internal scratch']
  %s0 = inlined_call_operand.vmem [shape: f32[32,32], index: 0, kind: input, shape index: {}]
  %s1 = inlined_call_operand.vmem [shape: f32[32,96], index: 1, kind: input, shape index: {}]
  %s2 = inlined_call_operand.vmem [shape: f32[32,32], index: 2, kind: input, shape index: {}]
  %s3 = inlined_call_operand.hbm [shape: f32[32,32], index: 3, kind: input, shape index: {}]
  %s4 = inlined_call_operand.hbm [shape: f32[32,64], index: 4, kind: input, shape index: {}]
  %s5 = inlined_call_operand.vmem [shape: f32[64,32], index: 5, kind: input, shape index: {}]
  %s6 = inlined_call_operand.vmem [shape: f32[2], index: 6, kind: input, shape index: {}]
  %s7 = inlined_call_operand.hbm [shape: f32[32,128], index: 7, kind: output, shape index: {}]
  %s8 = sld [smem:[#allocation0]]
  $region50: #{tpu_custom_call.1} parent=0
    _
  %s10 = ssub.s32 1, %s8
  %s11 = scalar_select 0, %s10, %s8
  $region1: #{tpu_custom_call.1} parent=0
    #allocation2 [shape = 'u8[16384]{0}', space=vmem, size = 0x4000, scoped, tag = 'input window, operand 3, single buffered']
    #allocation3 [shape = 's32[1]{0}', space=sflag, size = 0x4, scoped, tag = 'scoped memory for tpu_custom_call.1']
    #allocation4 [shape = 's32[1]{0}', space=sflag, size = 0x4, scoped, tag = 'scoped memory for tpu_custom_call.1']
    #allocation5 [shape = 's32[1]{0}', space=sflag, size = 0x4, scoped, tag = 'scoped memory for tpu_custom_call.1']
    #allocation6 [shape = 'u8[16384]{0}', space=vmem, size = 0x4000, scoped, tag = 'input window, operand 4, single buffered']
    #allocation7 [shape = 's32[1]{0}', space=sflag, size = 0x4, scoped, tag = 'scoped memory for tpu_custom_call.1']
    #allocation8 [shape = 'u8[512]{0}', space=smem, size = 0x200, scoped, tag = 'input window, operand 6, single buffered']
    #allocation9 [shape = 'u8[16384]{0}', space=vmem, size = 0x4000, scoped, tag = 'output window, operand 0, single buffered']
    %12 = vsyncpa [#allocation3], 0
    %13 = vsyncpa [#allocation7], 0
    %14 = vsyncpa [#allocation5], 0
    %15 = vsyncpa [#allocation4], 0
    // Predicated region
    $region2: #{tpu_custom_call.1} parent=1 // pred_check
      _
    $region3: #{tpu_custom_call.1} parent=1 // pred_check_branch
      %17 = sbr.rel (0) target = $region5
    $region4: #{tpu_custom_call.1} parent=1 // pred_region
      _
    $region5: #{tpu_custom_call.1} parent=1 // pred_fallthru
      _
    // Predicated region
    $region6: #{tpu_custom_call.1} parent=1 // pred_check
      _
    $region7: #{tpu_custom_call.1} parent=1 // pred_check_branch
      %19 = sbr.rel (0) target = $region9
    $region8: #{tpu_custom_call.1} parent=1 // pred_region
      _
    $region9: #{tpu_custom_call.1} parent=1 // pred_fallthru
      _
    // Predicated region
    $region10: #{tpu_custom_call.1} parent=1 // pred_check
      _
    $region11: #{tpu_custom_call.1} parent=1 // pred_check_branch
      %21 = sbr.rel (0) target = $region13
    $region12: #{tpu_custom_call.1} parent=1 // pred_region
      _
    $region13: #{tpu_custom_call.1} parent=1 // pred_fallthru
      _
    // Predicated region
    $region14: #{tpu_custom_call.1} parent=1 // pred_check
      _
    $region15: #{tpu_custom_call.1} parent=1 // pred_check_branch
      %23 = sbr.rel (0) target = $region17
    $region16: #{tpu_custom_call.1} parent=1 // pred_region
      %s25 = ssub.s32 512, 512
      %26 = vsyncadd [#allocation3], %s25
      %s27 = sshll.u32 [#allocation2], 4
      %s28 = int_to_ptr.vmem [resolvable:$true] %s27
      %33 = dma.hbm_to_vmem [thread:$0]  %s3, 512, %s28, [#allocation3], 128, 128, 8
    $region17: #{tpu_custom_call.1} parent=1 // pred_fallthru
      _
    // Predicated region
    $region18: #{tpu_custom_call.1} parent=1 // pred_check
      _
    $region19: #{tpu_custom_call.1} parent=1 // pred_check_branch
      %35 = sbr.rel (0) target = $region21
    $region20: #{tpu_custom_call.1} parent=1 // pred_region
      %s37 = ssub.s32 512, 512
      %38 = vsyncadd [#allocation7], %s37
      %s39 = sshll.u32 [#allocation6], 4
      %s40 = int_to_ptr.vmem [resolvable:$true] %s39
      %45 = dma.hbm_to_vmem [thread:$0]  %s4, 512, %s40, [#allocation7], 128, 128, 8
    $region21: #{tpu_custom_call.1} parent=1 // pred_fallthru
      _
    // Predicated region
    $region22: #{tpu_custom_call.1} parent=1 // pred_check
      _
    $region23: #{tpu_custom_call.1} parent=1 // pred_check_branch
      %47 = sbr.rel (0) target = $region25
    $region24: #{tpu_custom_call.1} parent=1 // pred_region
      _
    $region25: #{tpu_custom_call.1} parent=1 // pred_fallthru
      _
    // Predicated region
    $region26: #{tpu_custom_call.1} parent=1 // pred_check
      _
    $region27: #{tpu_custom_call.1} parent=1 // pred_check_branch
      %49 = sbr.rel (0) target = $region29
    $region28: #{tpu_custom_call.1} parent=1 // pred_region
      %s51 = ssub.s32 16, 16
      %52 = vsyncadd [#allocation5], %s51
      %s54 = sshll.u32 %s6, 4
      %s55 = int_to_ptr.vmem [resolvable:$true] %s54
      %57 = dma.vmem_to_smem %s55, 16, [#allocation8], [#allocation5]
    $region29: #{tpu_custom_call.1} parent=1 // pred_fallthru
      _
    // Predicated region
    $region30: #{tpu_custom_call.1} parent=1 // pred_check
      _
    $region31: #{tpu_custom_call.1} parent=1 // pred_check_branch
      %59 = sbr.rel (0) target = $region33
    $region32: #{tpu_custom_call.1} parent=1 // pred_region
      %60 = dma.done [#allocation3], 512
    $region33: #{tpu_custom_call.1} parent=1 // pred_fallthru
      _
    // Predicated region
    $region34: #{tpu_custom_call.1} parent=1 // pred_check
      _
    $region35: #{tpu_custom_call.1} parent=1 // pred_check_branch
      %62 = sbr.rel (0) target = $region37
    $region36: #{tpu_custom_call.1} parent=1 // pred_region
      %63 = dma.done [#allocation7], 512
    $region37: #{tpu_custom_call.1} parent=1 // pred_fallthru
      _
    // Predicated region
    $region38: #{tpu_custom_call.1} parent=1 // pred_check
      _
    $region39: #{tpu_custom_call.1} parent=1 // pred_check_branch
      %65 = sbr.rel (0) target = $region41
    $region40: #{tpu_custom_call.1} parent=1 // pred_region
      %66 = dma.done [#allocation5], 16
    $region41: #{tpu_custom_call.1} parent=1 // pred_fallthru
      _
    %67 = sfence
    %v68 = vld [vmem:[%s0] sm:$0xff]
    %v69 = vld [vmem:[%s0 + $0x8] sm:$0xff]
    %v70 = vld [vmem:[%s0 + $0x10] sm:$0xff]
    %v71 = vld [vmem:[%s0 + $0x18] sm:$0xff]
    %v72 = vld [vmem:[#allocation2] sm:$0xff]
    %v73 = vld [vmem:[#allocation2 + $0x8] sm:$0xff]
    %v74 = vld [vmem:[#allocation2 + $0x10] sm:$0xff]
    %v75 = vld [vmem:[#allocation2 + $0x18] sm:$0xff]
    %v76 = vld [vmem:[%s1] sm:$0xff]
    %v77 = vld [vmem:[%s1 + $0x8] sm:$0xff]
    %v78 = vld [vmem:[%s1 + $0x10] sm:$0xff]
    %v79 = vld [vmem:[%s1 + $0x18] sm:$0xff]
    %vm80 = vcmask 261120
    %v82 = vsel %vm80, %v68, 0
    %v85 = vsel %vm80, %v69, 0
    %v88 = vsel %vm80, %v70, 0
    %v91 = vsel %vm80, %v71, 0
    %93 = vmatprep.subr.mxu0 0.0
    %94 = vmatpush1.msra.mxu0 %v76
    %95 = vmatprep.subr.mxu0 0.0
    %96 = vmatpush1.msra.mxu0 %v77
    %97 = vmatprep.subr.mxu0 0.0
    %98 = vmatpush1.msra.mxu0 %v78
    %99 = vmatprep.subr.mxu0 0.0
    %100 = vmatpush1.msra.mxu0 %v79
    %101 = vmatprep.subr.mxu0 0.0
    %102 = vmatpush1.msra.mxu0 0.0
    %103 = vmatprep.subr.mxu0 0.0
    %104 = vmatpush1.msra.mxu0 0.0
    %105 = vmatprep.subr.mxu0 0.0
    %106 = vmatpush1.msra.mxu0 0.0
    %107 = vmatprep.subr.mxu0 0.0
    %108 = vmatpush1.msra.mxu0 0.0
    %109 = vmatprep.subr.mxu0 0.0
    %110 = vmatpush1.msra.mxu0 0.0
    %111 = vmatprep.subr.mxu0 0.0
    %112 = vmatpush1.msra.mxu0 0.0
    %113 = vmatprep.subr.mxu0 0.0
    %114 = vmatpush1.msra.mxu0 0.0
    %115 = vmatprep.subr.mxu0 0.0
    %116 = vmatpush1.msra.mxu0 0.0
    %117 = vmatprep.subr.mxu0 0.0
    %118 = vmatpush1.msra.mxu0 0.0
    %119 = vmatprep.subr.mxu0 0.0
    %120 = vmatpush1.msra.mxu0 0.0
    %121 = vmatprep.subr.mxu0 0.0
    %122 = vmatpush1.msra.mxu0 0.0
    %123 = vmatprep.subr.mxu0 0.0
    %124 = vmatpush1.msra.mxu0 0.0
    %125 = vmatprep.subr.mxu0 0.0
    %126 = vmatpush1.msra.mxu0 0.0
    %127 = vmatprep.subr.mxu0 0.0
    %128 = vmatpush1.msra.mxu0 0.0
    %129 = vmatprep.subr.mxu0 0.0
    %130 = vmatpush1.msra.mxu0 0.0
    %131 = vmatprep.subr.mxu0 0.0
    %132 = vmatpush1.msra.mxu0 0.0
    %133 = vmatprep.subr.mxu0 0.0
    %134 = vmatpush1.msra.mxu0 0.0
    %135 = vmatprep.subr.mxu0 0.0
    %136 = vmatpush1.msra.mxu0 0.0
    %137 = vmatprep.subr.mxu0 0.0
    %138 = vmatpush1.msra.mxu0 0.0
    %139 = vmatprep.subr.mxu0 0.0
    %140 = vmatpush1.msra.mxu0 0.0
    %141 = vmatprep.subr.mxu0 0.0
    %142 = vmatpush1.msra.mxu0 0.0
    %143 = vmatprep.subr.mxu0 0.0
    %144 = vmatpush1.msra.mxu0 0.0
    %145 = vmatprep.subr.mxu0 0.0
    %146 = vmatpush1.msra.mxu0 0.0
    %147 = vmatprep.subr.mxu0 0.0
    %148 = vmatpush1.msra.mxu0 0.0
    %149 = vmatprep.subr.mxu0 0.0
    %150 = vmatpush1.msra.mxu0 0.0
    %151 = vmatprep.subr.mxu0 0.0
    %152 = vmatpush1.msra.mxu0 0.0
    %153 = vmatprep.subr.mxu0 0.0
    %154 = vmatpush1.msra.mxu0 0.0
    %155 = vmatprep.subr.mxu0 0.0
    %156 = vmatpush1.msra.mxu0 0.0
    %157 = vmatprep.mubr.f32.mxu0 0.0
    %158 = vmatmul.mubr.f32.gmra.mrb[0].mxu0 %v82
    %v159 = vpop.f32.mrb[0].mxu0
    %v160 = vadd.f32 0.0, %v159
    %v161 = vpop.f32.mrb[0].mxu0
    %162 = vmatprep.mubr.f32.mxu0 0.0
    %163 = vmatmul.mubr.f32.gmra.mrb[0].mxu0 %v85
    %v164 = vpop.f32.mrb[0].mxu0
    %v165 = vadd.f32 0.0, %v164
    %v166 = vpop.f32.mrb[0].mxu0
    %167 = vmatprep.mubr.f32.mxu0 0.0
    %168 = vmatmul.mubr.f32.gmra.mrb[0].mxu0 %v88
    %v169 = vpop.f32.mrb[0].mxu0
    %v170 = vadd.f32 0.0, %v169
    %v171 = vpop.f32.mrb[0].mxu0
    %172 = vmatprep.mubr.f32.mxu0 0.0
    %173 = vmatmul.mubr.f32.gmra.mrb[0].mxu0 %v91
    %v174 = vpop.f32.mrb[0].mxu0
    %v175 = vadd.f32 0.0, %v174
    %v176 = vpop.f32.mrb[0].mxu0
    %177 = vdwg.mxu0
    %180 = vrot.lane.b32.xlu0 %v160, 96
    %v181 = vpop.permute.xlu0 %180
    %182 = vrot.lane.b32.xlu0 %v165, 96
    %v183 = vpop.permute.xlu0 %182
    %vm184 = vcmask 64512
    %v185 = vsel %vm184, %v160, 0
    %v187 = vsel %vm184, %v165, 0
    %v189 = vsel %vm184, %v181, 0
    %v191 = vsel %vm184, %v183, 0
    %193 = vmatprep.subr.mxu0 0.0
    %194 = vmatpush1.xpose.msra.mxu0 %v189
    %195 = vmatprep.subr.mxu0 0.0
    %196 = vmatpush1.xpose.msra.mxu0 %v191
    %197 = vmatprep.subr.mxu0 0.0
    %198 = vmatpush1.xpose.msra.mxu0 0.0
    %199 = vmatprep.subr.mxu0 0.0
    %200 = vmatpush1.xpose.msra.mxu0 0.0
    %201 = vmatprep.subr.mxu0 0.0
    %202 = vmatpush1.xpose.msra.mxu0 0.0
    %203 = vmatprep.subr.mxu0 0.0
    %204 = vmatpush1.xpose.msra.mxu0 0.0
    %205 = vmatprep.subr.mxu0 0.0
    %206 = vmatpush1.xpose.msra.mxu0 0.0
    %207 = vmatprep.subr.mxu0 0.0
    %208 = vmatpush1.xpose.msra.mxu0 0.0
    %209 = vmatprep.subr.mxu0 0.0
    %210 = vmatpush1.xpose.msra.mxu0 0.0
    %211 = vmatprep.subr.mxu0 0.0
    %212 = vmatpush1.xpose.msra.mxu0 0.0
    %213 = vmatprep.subr.mxu0 0.0
    %214 = vmatpush1.xpose.msra.mxu0 0.0
    %215 = vmatprep.subr.mxu0 0.0
    %216 = vmatpush1.xpose.msra.mxu0 0.0
    %217 = vmatprep.subr.mxu0 0.0
    %218 = vmatpush1.xpose.msra.mxu0 0.0
    %219 = vmatprep.subr.mxu0 0.0
    %220 = vmatpush1.xpose.msra.mxu0 0.0
    %221 = vmatprep.subr.mxu0 0.0
    %222 = vmatpush1.xpose.msra.mxu0 0.0
    %223 = vmatprep.subr.mxu0 0.0
    %224 = vmatpush1.xpose.msra.mxu0 0.0
    %225 = vmatprep.subr.mxu0 0.0
    %226 = vmatpush1.xpose.msra.mxu0 0.0
    %227 = vmatprep.subr.mxu0 0.0
    %228 = vmatpush1.xpose.msra.mxu0 0.0
    %229 = vmatprep.subr.mxu0 0.0
    %230 = vmatpush1.xpose.msra.mxu0 0.0
    %231 = vmatprep.subr.mxu0 0.0
    %232 = vmatpush1.xpose.msra.mxu0 0.0
    %233 = vmatprep.subr.mxu0 0.0
    %234 = vmatpush1.xpose.msra.mxu0 0.0
    %235 = vmatprep.subr.mxu0 0.0
    %236 = vmatpush1.xpose.msra.mxu0 0.0
    %237 = vmatprep.subr.mxu0 0.0
    %238 = vmatpush1.xpose.msra.mxu0 0.0
    %239 = vmatprep.subr.mxu0 0.0
    %240 = vmatpush1.xpose.msra.mxu0 0.0
    %241 = vmatprep.subr.mxu0 0.0
    %242 = vmatpush1.xpose.msra.mxu0 0.0
    %243 = vmatprep.subr.mxu0 0.0
    %244 = vmatpush1.xpose.msra.mxu0 0.0
    %245 = vmatprep.subr.mxu0 0.0
    %246 = vmatpush1.xpose.msra.mxu0 0.0
    %247 = vmatprep.subr.mxu0 0.0
    %248 = vmatpush1.xpose.msra.mxu0 0.0
    %249 = vmatprep.subr.mxu0 0.0
    %250 = vmatpush1.xpose.msra.mxu0 0.0
    %251 = vmatprep.subr.mxu0 0.0
    %252 = vmatpush1.xpose.msra.mxu0 0.0
    %253 = vmatprep.subr.mxu0 0.0
    %254 = vmatpush1.xpose.msra.mxu0 0.0
    %255 = vmatprep.subr.mxu0 0.0
    %256 = vmatpush1.xpose.msra.mxu0 0.0
    %257 = vmatprep.mubr.f32.mxu0 0.0
    %258 = vmatmul.mubr.f32.gmra.mrb[0].mxu0 %v185
    %v259 = vpop.f32.mrb[0].mxu0
    %v260 = vadd.f32 0.0, %v259
    %v261 = vpop.f32.mrb[0].mxu0
    %262 = vmatprep.mubr.f32.mxu0 0.0
    %263 = vmatmul.mubr.f32.gmra.mrb[0].mxu0 %v187
    %v264 = vpop.f32.mrb[0].mxu0
    %v265 = vadd.f32 0.0, %v264
    %v266 = vpop.f32.mrb[0].mxu0
    %267 = vdwg.mxu0
    %268 = vrot.lane.b32.xlu0 %v160, 120
    %v269 = vpop.permute.xlu0 %268
    %270 = vrot.lane.b32.xlu0 %v165, 120
    %v271 = vpop.permute.xlu0 %270
    %272 = vrot.lane.b32.xlu0 %v160, 88
    %v273 = vpop.permute.xlu0 %272
    %274 = vrot.lane.b32.xlu0 %v165, 88
    %v275 = vpop.permute.xlu0 %274
    %v276 = vsel %vm184, %v269, 0
    %v278 = vsel %vm184, %v271, 0
    %v280 = vsel %vm184, %v273, 0
    %v282 = vsel %vm184, %v275, 0
    %284 = vmatprep.subr.mxu0 0.0
    %285 = vmatpush1.xpose.msra.mxu0 %v280
    %286 = vmatprep.subr.mxu0 0.0
    %287 = vmatpush1.xpose.msra.mxu0 %v282
    %288 = vmatprep.subr.mxu0 0.0
    %289 = vmatpush1.xpose.msra.mxu0 0.0
    %290 = vmatprep.subr.mxu0 0.0
    %291 = vmatpush1.xpose.msra.mxu0 0.0
    %292 = vmatprep.subr.mxu0 0.0
    %293 = vmatpush1.xpose.msra.mxu0 0.0
    %294 = vmatprep.subr.mxu0 0.0
    %295 = vmatpush1.xpose.msra.mxu0 0.0
    %296 = vmatprep.subr.mxu0 0.0
    %297 = vmatpush1.xpose.msra.mxu0 0.0
    %298 = vmatprep.subr.mxu0 0.0
    %299 = vmatpush1.xpose.msra.mxu0 0.0
    %300 = vmatprep.subr.mxu0 0.0
    %301 = vmatpush1.xpose.msra.mxu0 0.0
    %302 = vmatprep.subr.mxu0 0.0
    %303 = vmatpush1.xpose.msra.mxu0 0.0
    %304 = vmatprep.subr.mxu0 0.0
    %305 = vmatpush1.xpose.msra.mxu0 0.0
    %306 = vmatprep.subr.mxu0 0.0
    %307 = vmatpush1.xpose.msra.mxu0 0.0
    %308 = vmatprep.subr.mxu0 0.0
    %309 = vmatpush1.xpose.msra.mxu0 0.0
    %310 = vmatprep.subr.mxu0 0.0
    %311 = vmatpush1.xpose.msra.mxu0 0.0
    %312 = vmatprep.subr.mxu0 0.0
    %313 = vmatpush1.xpose.msra.mxu0 0.0
    %314 = vmatprep.subr.mxu0 0.0
    %315 = vmatpush1.xpose.msra.mxu0 0.0
    %316 = vmatprep.subr.mxu0 0.0
    %317 = vmatpush1.xpose.msra.mxu0 0.0
    %318 = vmatprep.subr.mxu0 0.0
    %319 = vmatpush1.xpose.msra.mxu0 0.0
    %320 = vmatprep.subr.mxu0 0.0
    %321 = vmatpush1.xpose.msra.mxu0 0.0
    %322 = vmatprep.subr.mxu0 0.0
    %323 = vmatpush1.xpose.msra.mxu0 0.0
    %324 = vmatprep.subr.mxu0 0.0
    %325 = vmatpush1.xpose.msra.mxu0 0.0
    %326 = vmatprep.subr.mxu0 0.0
    %327 = vmatpush1.xpose.msra.mxu0 0.0
    %328 = vmatprep.subr.mxu0 0.0
    %329 = vmatpush1.xpose.msra.mxu0 0.0
    %330 = vmatprep.subr.mxu0 0.0
    %331 = vmatpush1.xpose.msra.mxu0 0.0
    %332 = vmatprep.subr.mxu0 0.0
    %333 = vmatpush1.xpose.msra.mxu0 0.0
    %334 = vmatprep.subr.mxu0 0.0
    %335 = vmatpush1.xpose.msra.mxu0 0.0
    %336 = vmatprep.subr.mxu0 0.0
    %337 = vmatpush1.xpose.msra.mxu0 0.0
    %338 = vmatprep.subr.mxu0 0.0
    %339 = vmatpush1.xpose.msra.mxu0 0.0
    %340 = vmatprep.subr.mxu0 0.0
    %341 = vmatpush1.xpose.msra.mxu0 0.0
    %342 = vmatprep.subr.mxu0 0.0
    %343 = vmatpush1.xpose.msra.mxu0 0.0
    %344 = vmatprep.subr.mxu0 0.0
    %345 = vmatpush1.xpose.msra.mxu0 0.0
    %346 = vmatprep.subr.mxu0 0.0
    %347 = vmatpush1.xpose.msra.mxu0 0.0
    %348 = vmatprep.mubr.f32.mxu0 0.0
    %349 = vmatmul.mubr.f32.gmra.mrb[0].mxu0 %v276
    %v350 = vpop.f32.mrb[0].mxu0
    %v351 = vadd.f32 0.0, %v350
    %v352 = vpop.f32.mrb[0].mxu0
    %353 = vmatprep.mubr.f32.mxu0 0.0
    %354 = vmatmul.mubr.f32.gmra.mrb[0].mxu0 %v278
    %v355 = vpop.f32.mrb[0].mxu0
    %v356 = vadd.f32 0.0, %v355
    %v357 = vpop.f32.mrb[0].mxu0
    %358 = vdwg.mxu0
    %359 = vrot.lane.b32.xlu0 %v160, 112
    %v360 = vpop.permute.xlu0 %359
    %361 = vrot.lane.b32.xlu0 %v165, 112
    %v362 = vpop.permute.xlu0 %361
    %363 = vrot.lane.b32.xlu0 %v160, 80
    %v364 = vpop.permute.xlu0 %363
    %365 = vrot.lane.b32.xlu0 %v165, 80
    %v366 = vpop.permute.xlu0 %365
    %v367 = vsel %vm184, %v360, 0
    %v369 = vsel %vm184, %v362, 0
    %v371 = vsel %vm184, %v364, 0
    %v373 = vsel %vm184, %v366, 0
    %375 = vmatprep.subr.mxu0 0.0
    %376 = vmatpush1.xpose.msra.mxu0 %v371
    %377 = vmatprep.subr.mxu0 0.0
    %378 = vmatpush1.xpose.msra.mxu0 %v373
    %379 = vmatprep.subr.mxu0 0.0
    %380 = vmatpush1.xpose.msra.mxu0 0.0
    %381 = vmatprep.subr.mxu0 0.0
    %382 = vmatpush1.xpose.msra.mxu0 0.0
    %383 = vmatprep.subr.mxu0 0.0
    %384 = vmatpush1.xpose.msra.mxu0 0.0
    %385 = vmatprep.subr.mxu0 0.0
    %386 = vmatpush1.xpose.msra.mxu0 0.0
    %387 = vmatprep.subr.mxu0 0.0
    %388 = vmatpush1.xpose.msra.mxu0 0.0
    %389 = vmatprep.subr.mxu0 0.0
    %390 = vmatpush1.xpose.msra.mxu0 0.0
    %391 = vmatprep.subr.mxu0 0.0
    %392 = vmatpush1.xpose.msra.mxu0 0.0
    %393 = vmatprep.subr.mxu0 0.0
    %394 = vmatpush1.xpose.msra.mxu0 0.0
    %395 = vmatprep.subr.mxu0 0.0
    %396 = vmatpush1.xpose.msra.mxu0 0.0
    %397 = vmatprep.subr.mxu0 0.0
    %398 = vmatpush1.xpose.msra.mxu0 0.0
    %399 = vmatprep.subr.mxu0 0.0
    %400 = vmatpush1.xpose.msra.mxu0 0.0
    %401 = vmatprep.subr.mxu0 0.0
    %402 = vmatpush1.xpose.msra.mxu0 0.0
    %403 = vmatprep.subr.mxu0 0.0
    %404 = vmatpush1.xpose.msra.mxu0 0.0
    %405 = vmatprep.subr.mxu0 0.0
    %406 = vmatpush1.xpose.msra.mxu0 0.0
    %407 = vmatprep.subr.mxu0 0.0
    %408 = vmatpush1.xpose.msra.mxu0 0.0
    %409 = vmatprep.subr.mxu0 0.0
    %410 = vmatpush1.xpose.msra.mxu0 0.0
    %411 = vmatprep.subr.mxu0 0.0
    %412 = vmatpush1.xpose.msra.mxu0 0.0
    %413 = vmatprep.subr.mxu0 0.0
    %414 = vmatpush1.xpose.msra.mxu0 0.0
    %415 = vmatprep.subr.mxu0 0.0
    %416 = vmatpush1.xpose.msra.mxu0 0.0
    %417 = vmatprep.subr.mxu0 0.0
    %418 = vmatpush1.xpose.msra.mxu0 0.0
    %419 = vmatprep.subr.mxu0 0.0
    %420 = vmatpush1.xpose.msra.mxu0 0.0
    %421 = vmatprep.subr.mxu0 0.0
    %422 = vmatpush1.xpose.msra.mxu0 0.0
    %423 = vmatprep.subr.mxu0 0.0
    %424 = vmatpush1.xpose.msra.mxu0 0.0
    %425 = vmatprep.subr.mxu0 0.0
    %426 = vmatpush1.xpose.msra.mxu0 0.0
    %427 = vmatprep.subr.mxu0 0.0
    %428 = vmatpush1.xpose.msra.mxu0 0.0
    %429 = vmatprep.subr.mxu0 0.0
    %430 = vmatpush1.xpose.msra.mxu0 0.0
    %431 = vmatprep.subr.mxu0 0.0
    %432 = vmatpush1.xpose.msra.mxu0 0.0
    %433 = vmatprep.subr.mxu0 0.0
    %434 = vmatpush1.xpose.msra.mxu0 0.0
    %435 = vmatprep.subr.mxu0 0.0
    %436 = vmatpush1.xpose.msra.mxu0 0.0
    %437 = vmatprep.subr.mxu0 0.0
    %438 = vmatpush1.xpose.msra.mxu0 0.0
    %439 = vmatprep.mubr.f32.mxu0 0.0
    %440 = vmatmul.mubr.f32.gmra.mrb[0].mxu0 %v367
    %v441 = vpop.f32.mrb[0].mxu0
    %v442 = vadd.f32 0.0, %v441
    %v443 = vpop.f32.mrb[0].mxu0
    %444 = vmatprep.mubr.f32.mxu0 0.0
    %445 = vmatmul.mubr.f32.gmra.mrb[0].mxu0 %v369
    %v446 = vpop.f32.mrb[0].mxu0
    %v447 = vadd.f32 0.0, %v446
    %v448 = vpop.f32.mrb[0].mxu0
    %449 = vdwg.mxu0
    %450 = vrot.lane.b32.xlu0 %v160, 104
    %v451 = vpop.permute.xlu0 %450
    %452 = vrot.lane.b32.xlu0 %v165, 104
    %v453 = vpop.permute.xlu0 %452
    %454 = vrot.lane.b32.xlu0 %v160, 72
    %v455 = vpop.permute.xlu0 %454
    %456 = vrot.lane.b32.xlu0 %v165, 72
    %v457 = vpop.permute.xlu0 %456
    %v458 = vsel %vm184, %v451, 0
    %v460 = vsel %vm184, %v453, 0
    %v462 = vsel %vm184, %v455, 0
    %v464 = vsel %vm184, %v457, 0
    %466 = vmatprep.subr.mxu0 0.0
    %467 = vmatpush1.xpose.msra.mxu0 %v462
    %468 = vmatprep.subr.mxu0 0.0
    %469 = vmatpush1.xpose.msra.mxu0 %v464
    %470 = vmatprep.subr.mxu0 0.0
    %471 = vmatpush1.xpose.msra.mxu0 0.0
    %472 = vmatprep.subr.mxu0 0.0
    %473 = vmatpush1.xpose.msra.mxu0 0.0
    %474 = vmatprep.subr.mxu0 0.0
    %475 = vmatpush1.xpose.msra.mxu0 0.0
    %476 = vmatprep.subr.mxu0 0.0
    %477 = vmatpush1.xpose.msra.mxu0 0.0
    %478 = vmatprep.subr.mxu0 0.0
    %479 = vmatpush1.xpose.msra.mxu0 0.0
    %480 = vmatprep.subr.mxu0 0.0
    %481 = vmatpush1.xpose.msra.mxu0 0.0
    %482 = vmatprep.subr.mxu0 0.0
    %483 = vmatpush1.xpose.msra.mxu0 0.0
    %484 = vmatprep.subr.mxu0 0.0
    %485 = vmatpush1.xpose.msra.mxu0 0.0
    %486 = vmatprep.subr.mxu0 0.0
    %487 = vmatpush1.xpose.msra.mxu0 0.0
    %488 = vmatprep.subr.mxu0 0.0
    %489 = vmatpush1.xpose.msra.mxu0 0.0
    %490 = vmatprep.subr.mxu0 0.0
    %491 = vmatpush1.xpose.msra.mxu0 0.0
    %492 = vmatprep.subr.mxu0 0.0
    %493 = vmatpush1.xpose.msra.mxu0 0.0
    %494 = vmatprep.subr.mxu0 0.0
    %495 = vmatpush1.xpose.msra.mxu0 0.0
    %496 = vmatprep.subr.mxu0 0.0
    %497 = vmatpush1.xpose.msra.mxu0 0.0
    %498 = vmatprep.subr.mxu0 0.0
    %499 = vmatpush1.xpose.msra.mxu0 0.0
    %500 = vmatprep.subr.mxu0 0.0
    %501 = vmatpush1.xpose.msra.mxu0 0.0
    %502 = vmatprep.subr.mxu0 0.0
    %503 = vmatpush1.xpose.msra.mxu0 0.0
    %504 = vmatprep.subr.mxu0 0.0
    %505 = vmatpush1.xpose.msra.mxu0 0.0
    %506 = vmatprep.subr.mxu0 0.0
    %507 = vmatpush1.xpose.msra.mxu0 0.0
    %508 = vmatprep.subr.mxu0 0.0
    %509 = vmatpush1.xpose.msra.mxu0 0.0
    %510 = vmatprep.subr.mxu0 0.0
    %511 = vmatpush1.xpose.msra.mxu0 0.0
    %512 = vmatprep.subr.mxu0 0.0
    %513 = vmatpush1.xpose.msra.mxu0 0.0
    %514 = vmatprep.subr.mxu0 0.0
    %515 = vmatpush1.xpose.msra.mxu0 0.0
    %516 = vmatprep.subr.mxu0 0.0
    %517 = vmatpush1.xpose.msra.mxu0 0.0
    %518 = vmatprep.subr.mxu0 0.0
    %519 = vmatpush1.xpose.msra.mxu0 0.0
    %520 = vmatprep.subr.mxu0 0.0
    %521 = vmatpush1.xpose.msra.mxu0 0.0
    %522 = vmatprep.subr.mxu0 0.0
    %523 = vmatpush1.xpose.msra.mxu0 0.0
    %524 = vmatprep.subr.mxu0 0.0
    %525 = vmatpush1.xpose.msra.mxu0 0.0
    %526 = vmatprep.subr.mxu0 0.0
    %527 = vmatpush1.xpose.msra.mxu0 0.0
    %528 = vmatprep.subr.mxu0 0.0
    %529 = vmatpush1.xpose.msra.mxu0 0.0
    %530 = vmatprep.mubr.f32.mxu0 0.0
    %531 = vmatmul.mubr.f32.gmra.mrb[0].mxu0 %v458
    %v532 = vpop.f32.mrb[0].mxu0
    %v533 = vadd.f32 0.0, %v532
    %v534 = vpop.f32.mrb[0].mxu0
    %535 = vmatprep.mubr.f32.mxu0 0.0
    %536 = vmatmul.mubr.f32.gmra.mrb[0].mxu0 %v460
    %v537 = vpop.f32.mrb[0].mxu0
    %v538 = vadd.f32 0.0, %v537
    %v539 = vpop.f32.mrb[0].mxu0
    %540 = vdwg.mxu0
    %543 = vrot.lane.b32.xlu0 %v170, 96
    %v544 = vpop.permute.xlu0 %543
    %545 = vrot.lane.b32.xlu0 %v175, 96
    %v546 = vpop.permute.xlu0 %545
    %v547 = vsel %vm184, %v170, 0
    %v549 = vsel %vm184, %v175, 0
    %v551 = vsel %vm184, %v544, 0
    %v553 = vsel %vm184, %v546, 0
    %555 = vmatprep.subr.mxu0 0.0
    %556 = vmatpush1.xpose.msra.mxu0 %v551
    %557 = vmatprep.subr.mxu0 0.0
    %558 = vmatpush1.xpose.msra.mxu0 %v553
    %559 = vmatprep.subr.mxu0 0.0
    %560 = vmatpush1.xpose.msra.mxu0 0.0
    %561 = vmatprep.subr.mxu0 0.0
    %562 = vmatpush1.xpose.msra.mxu0 0.0
    %563 = vmatprep.subr.mxu0 0.0
    %564 = vmatpush1.xpose.msra.mxu0 0.0
    %565 = vmatprep.subr.mxu0 0.0
    %566 = vmatpush1.xpose.msra.mxu0 0.0
    %567 = vmatprep.subr.mxu0 0.0
    %568 = vmatpush1.xpose.msra.mxu0 0.0
    %569 = vmatprep.subr.mxu0 0.0
    %570 = vmatpush1.xpose.msra.mxu0 0.0
    %571 = vmatprep.subr.mxu0 0.0
    %572 = vmatpush1.xpose.msra.mxu0 0.0
    %573 = vmatprep.subr.mxu0 0.0
    %574 = vmatpush1.xpose.msra.mxu0 0.0
    %575 = vmatprep.subr.mxu0 0.0
    %576 = vmatpush1.xpose.msra.mxu0 0.0
    %577 = vmatprep.subr.mxu0 0.0
    %578 = vmatpush1.xpose.msra.mxu0 0.0
    %579 = vmatprep.subr.mxu0 0.0
    %580 = vmatpush1.xpose.msra.mxu0 0.0
    %581 = vmatprep.subr.mxu0 0.0
    %582 = vmatpush1.xpose.msra.mxu0 0.0
    %583 = vmatprep.subr.mxu0 0.0
    %584 = vmatpush1.xpose.msra.mxu0 0.0
    %585 = vmatprep.subr.mxu0 0.0
    %586 = vmatpush1.xpose.msra.mxu0 0.0
    %587 = vmatprep.subr.mxu0 0.0
    %588 = vmatpush1.xpose.msra.mxu0 0.0
    %589 = vmatprep.subr.mxu0 0.0
    %590 = vmatpush1.xpose.msra.mxu0 0.0
    %591 = vmatprep.subr.mxu0 0.0
    %592 = vmatpush1.xpose.msra.mxu0 0.0
    %593 = vmatprep.subr.mxu0 0.0
    %594 = vmatpush1.xpose.msra.mxu0 0.0
    %595 = vmatprep.subr.mxu0 0.0
    %596 = vmatpush1.xpose.msra.mxu0 0.0
    %597 = vmatprep.subr.mxu0 0.0
    %598 = vmatpush1.xpose.msra.mxu0 0.0
    %599 = vmatprep.subr.mxu0 0.0
    %600 = vmatpush1.xpose.msra.mxu0 0.0
    %601 = vmatprep.subr.mxu0 0.0
    %602 = vmatpush1.xpose.msra.mxu0 0.0
    %603 = vmatprep.subr.mxu0 0.0
    %604 = vmatpush1.xpose.msra.mxu0 0.0
    %605 = vmatprep.subr.mxu0 0.0
    %606 = vmatpush1.xpose.msra.mxu0 0.0
    %607 = vmatprep.subr.mxu0 0.0
    %608 = vmatpush1.xpose.msra.mxu0 0.0
    %609 = vmatprep.subr.mxu0 0.0
    %610 = vmatpush1.xpose.msra.mxu0 0.0
    %611 = vmatprep.subr.mxu0 0.0
    %612 = vmatpush1.xpose.msra.mxu0 0.0
    %613 = vmatprep.subr.mxu0 0.0
    %614 = vmatpush1.xpose.msra.mxu0 0.0
    %615 = vmatprep.subr.mxu0 0.0
    %616 = vmatpush1.xpose.msra.mxu0 0.0
    %617 = vmatprep.subr.mxu0 0.0
    %618 = vmatpush1.xpose.msra.mxu0 0.0
    %619 = vmatprep.mubr.f32.mxu0 0.0
    %620 = vmatmul.mubr.f32.gmra.mrb[0].mxu0 %v547
    %v621 = vpop.f32.mrb[0].mxu0
    %v622 = vadd.f32 0.0, %v621
    %v623 = vpop.f32.mrb[0].mxu0
    %624 = vmatprep.mubr.f32.mxu0 0.0
    %625 = vmatmul.mubr.f32.gmra.mrb[0].mxu0 %v549
    %v626 = vpop.f32.mrb[0].mxu0
    %v627 = vadd.f32 0.0, %v626
    %v628 = vpop.f32.mrb[0].mxu0
    %629 = vdwg.mxu0
    %630 = vrot.lane.b32.xlu0 %v170, 120
    %v631 = vpop.permute.xlu0 %630
    %632 = vrot.lane.b32.xlu0 %v175, 120
    %v633 = vpop.permute.xlu0 %632
    %634 = vrot.lane.b32.xlu0 %v170, 88
    %v635 = vpop.permute.xlu0 %634
    %636 = vrot.lane.b32.xlu0 %v175, 88
    %v637 = vpop.permute.xlu0 %636
    %v638 = vsel %vm184, %v631, 0
    %v640 = vsel %vm184, %v633, 0
    %v642 = vsel %vm184, %v635, 0
    %v644 = vsel %vm184, %v637, 0
    %646 = vmatprep.subr.mxu0 0.0
    %647 = vmatpush1.xpose.msra.mxu0 %v642
    %648 = vmatprep.subr.mxu0 0.0
    %649 = vmatpush1.xpose.msra.mxu0 %v644
    %650 = vmatprep.subr.mxu0 0.0
    %651 = vmatpush1.xpose.msra.mxu0 0.0
    %652 = vmatprep.subr.mxu0 0.0
    %653 = vmatpush1.xpose.msra.mxu0 0.0
    %654 = vmatprep.subr.mxu0 0.0
    %655 = vmatpush1.xpose.msra.mxu0 0.0
    %656 = vmatprep.subr.mxu0 0.0
    %657 = vmatpush1.xpose.msra.mxu0 0.0
    %658 = vmatprep.subr.mxu0 0.0
    %659 = vmatpush1.xpose.msra.mxu0 0.0
    %660 = vmatprep.subr.mxu0 0.0
    %661 = vmatpush1.xpose.msra.mxu0 0.0
    %662 = vmatprep.subr.mxu0 0.0
    %663 = vmatpush1.xpose.msra.mxu0 0.0
    %664 = vmatprep.subr.mxu0 0.0
    %665 = vmatpush1.xpose.msra.mxu0 0.0
    %666 = vmatprep.subr.mxu0 0.0
    %667 = vmatpush1.xpose.msra.mxu0 0.0
    %668 = vmatprep.subr.mxu0 0.0
    %669 = vmatpush1.xpose.msra.mxu0 0.0
    %670 = vmatprep.subr.mxu0 0.0
    %671 = vmatpush1.xpose.msra.mxu0 0.0
    %672 = vmatprep.subr.mxu0 0.0
    %673 = vmatpush1.xpose.msra.mxu0 0.0
    %674 = vmatprep.subr.mxu0 0.0
    %675 = vmatpush1.xpose.msra.mxu0 0.0
    %676 = vmatprep.subr.mxu0 0.0
    %677 = vmatpush1.xpose.msra.mxu0 0.0
    %678 = vmatprep.subr.mxu0 0.0
    %679 = vmatpush1.xpose.msra.mxu0 0.0
    %680 = vmatprep.subr.mxu0 0.0
    %681 = vmatpush1.xpose.msra.mxu0 0.0
    %682 = vmatprep.subr.mxu0 0.0
    %683 = vmatpush1.xpose.msra.mxu0 0.0
    %684 = vmatprep.subr.mxu0 0.0
    %685 = vmatpush1.xpose.msra.mxu0 0.0
    %686 = vmatprep.subr.mxu0 0.0
    %687 = vmatpush1.xpose.msra.mxu0 0.0
    %688 = vmatprep.subr.mxu0 0.0
    %689 = vmatpush1.xpose.msra.mxu0 0.0
    %690 = vmatprep.subr.mxu0 0.0
    %691 = vmatpush1.xpose.msra.mxu0 0.0
    %692 = vmatprep.subr.mxu0 0.0
    %693 = vmatpush1.xpose.msra.mxu0 0.0
    %694 = vmatprep.subr.mxu0 0.0
    %695 = vmatpush1.xpose.msra.mxu0 0.0
    %696 = vmatprep.subr.mxu0 0.0
    %697 = vmatpush1.xpose.msra.mxu0 0.0
    %698 = vmatprep.subr.mxu0 0.0
    %699 = vmatpush1.xpose.msra.mxu0 0.0
    %700 = vmatprep.subr.mxu0 0.0
    %701 = vmatpush1.xpose.msra.mxu0 0.0
    %702 = vmatprep.subr.mxu0 0.0
    %703 = vmatpush1.xpose.msra.mxu0 0.0
    %704 = vmatprep.subr.mxu0 0.0
    %705 = vmatpush1.xpose.msra.mxu0 0.0
    %706 = vmatprep.subr.mxu0 0.0
    %707 = vmatpush1.xpose.msra.mxu0 0.0
    %708 = vmatprep.subr.mxu0 0.0
    %709 = vmatpush1.xpose.msra.mxu0 0.0
    %710 = vmatprep.mubr.f32.mxu0 0.0
    %711 = vmatmul.mubr.f32.gmra.mrb[0].mxu0 %v638
    %v712 = vpop.f32.mrb[0].mxu0
    %v713 = vadd.f32 0.0, %v712
    %v714 = vpop.f32.mrb[0].mxu0
    %715 = vmatprep.mubr.f32.mxu0 0.0
    %716 = vmatmul.mubr.f32.gmra.mrb[0].mxu0 %v640
    %v717 = vpop.f32.mrb[0].mxu0
    %v718 = vadd.f32 0.0, %v717
    %v719 = vpop.f32.mrb[0].mxu0
    %720 = vdwg.mxu0
    %721 = vrot.lane.b32.xlu0 %v170, 112
    %v722 = vpop.permute.xlu0 %721
    %723 = vrot.lane.b32.xlu0 %v175, 112
    %v724 = vpop.permute.xlu0 %723
    %725 = vrot.lane.b32.xlu0 %v170, 80
    %v726 = vpop.permute.xlu0 %725
    %727 = vrot.lane.b32.xlu0 %v175, 80
    %v728 = vpop.permute.xlu0 %727
    %v729 = vsel %vm184, %v722, 0
    %v731 = vsel %vm184, %v724, 0
    %v733 = vsel %vm184, %v726, 0
    %v735 = vsel %vm184, %v728, 0
    %737 = vmatprep.subr.mxu0 0.0
    %738 = vmatpush1.xpose.msra.mxu0 %v733
    %739 = vmatprep.subr.mxu0 0.0
    %740 = vmatpush1.xpose.msra.mxu0 %v735
    %741 = vmatprep.subr.mxu0 0.0
    %742 = vmatpush1.xpose.msra.mxu0 0.0
    %743 = vmatprep.subr.mxu0 0.0
    %744 = vmatpush1.xpose.msra.mxu0 0.0
    %745 = vmatprep.subr.mxu0 0.0
    %746 = vmatpush1.xpose.msra.mxu0 0.0
    %747 = vmatprep.subr.mxu0 0.0
    %748 = vmatpush1.xpose.msra.mxu0 0.0
    %749 = vmatprep.subr.mxu0 0.0
    %750 = vmatpush1.xpose.msra.mxu0 0.0
    %751 = vmatprep.subr.mxu0 0.0
    %752 = vmatpush1.xpose.msra.mxu0 0.0
    %753 = vmatprep.subr.mxu0 0.0
    %754 = vmatpush1.xpose.msra.mxu0 0.0
    %755 = vmatprep.subr.mxu0 0.0
    %756 = vmatpush1.xpose.msra.mxu0 0.0
    %757 = vmatprep.subr.mxu0 0.0
    %758 = vmatpush1.xpose.msra.mxu0 0.0
    %759 = vmatprep.subr.mxu0 0.0
    %760 = vmatpush1.xpose.msra.mxu0 0.0
    %761 = vmatprep.subr.mxu0 0.0
    %762 = vmatpush1.xpose.msra.mxu0 0.0
    %763 = vmatprep.subr.mxu0 0.0
    %764 = vmatpush1.xpose.msra.mxu0 0.0
    %765 = vmatprep.subr.mxu0 0.0
    %766 = vmatpush1.xpose.msra.mxu0 0.0
    %767 = vmatprep.subr.mxu0 0.0
    %768 = vmatpush1.xpose.msra.mxu0 0.0
    %769 = vmatprep.subr.mxu0 0.0
    %770 = vmatpush1.xpose.msra.mxu0 0.0
    %771 = vmatprep.subr.mxu0 0.0
    %772 = vmatpush1.xpose.msra.mxu0 0.0
    %773 = vmatprep.subr.mxu0 0.0
    %774 = vmatpush1.xpose.msra.mxu0 0.0
    %775 = vmatprep.subr.mxu0 0.0
    %776 = vmatpush1.xpose.msra.mxu0 0.0
    %777 = vmatprep.subr.mxu0 0.0
    %778 = vmatpush1.xpose.msra.mxu0 0.0
    %779 = vmatprep.subr.mxu0 0.0
    %780 = vmatpush1.xpose.msra.mxu0 0.0
    %781 = vmatprep.subr.mxu0 0.0
    %782 = vmatpush1.xpose.msra.mxu0 0.0
    %783 = vmatprep.subr.mxu0 0.0
    %784 = vmatpush1.xpose.msra.mxu0 0.0
    %785 = vmatprep.subr.mxu0 0.0
    %786 = vmatpush1.xpose.msra.mxu0 0.0
    %787 = vmatprep.subr.mxu0 0.0
    %788 = vmatpush1.xpose.msra.mxu0 0.0
    %789 = vmatprep.subr.mxu0 0.0
    %790 = vmatpush1.xpose.msra.mxu0 0.0
    %791 = vmatprep.subr.mxu0 0.0
    %792 = vmatpush1.xpose.msra.mxu0 0.0
    %793 = vmatprep.subr.mxu0 0.0
    %794 = vmatpush1.xpose.msra.mxu0 0.0
    %795 = vmatprep.subr.mxu0 0.0
    %796 = vmatpush1.xpose.msra.mxu0 0.0
    %797 = vmatprep.subr.mxu0 0.0
    %798 = vmatpush1.xpose.msra.mxu0 0.0
    %799 = vmatprep.subr.mxu0 0.0
    %800 = vmatpush1.xpose.msra.mxu0 0.0
    %801 = vmatprep.mubr.f32.mxu0 0.0
    %802 = vmatmul.mubr.f32.gmra.mrb[0].mxu0 %v729
    %v803 = vpop.f32.mrb[0].mxu0
    %v804 = vadd.f32 0.0, %v803
    %v805 = vpop.f32.mrb[0].mxu0
    %806 = vmatprep.mubr.f32.mxu0 0.0
    %807 = vmatmul.mubr.f32.gmra.mrb[0].mxu0 %v731
    %v808 = vpop.f32.mrb[0].mxu0
    %v809 = vadd.f32 0.0, %v808
    %v810 = vpop.f32.mrb[0].mxu0
    %811 = vdwg.mxu0
    %812 = vrot.lane.b32.xlu0 %v170, 104
    %v813 = vpop.permute.xlu0 %812
    %814 = vrot.lane.b32.xlu0 %v175, 104
    %v815 = vpop.permute.xlu0 %814
    %816 = vrot.lane.b32.xlu0 %v170, 72
    %v817 = vpop.permute.xlu0 %816
    %818 = vrot.lane.b32.xlu0 %v175, 72
    %v819 = vpop.permute.xlu0 %818
    %v820 = vsel %vm184, %v813, 0
    %v822 = vsel %vm184, %v815, 0
    %v824 = vsel %vm184, %v817, 0
    %v826 = vsel %vm184, %v819, 0
    %828 = vmatprep.subr.mxu0 0.0
    %829 = vmatpush1.xpose.msra.mxu0 %v824
    %830 = vmatprep.subr.mxu0 0.0
    %831 = vmatpush1.xpose.msra.mxu0 %v826
    %832 = vmatprep.subr.mxu0 0.0
    %833 = vmatpush1.xpose.msra.mxu0 0.0
    %834 = vmatprep.subr.mxu0 0.0
    %835 = vmatpush1.xpose.msra.mxu0 0.0
    %836 = vmatprep.subr.mxu0 0.0
    %837 = vmatpush1.xpose.msra.mxu0 0.0
    %838 = vmatprep.subr.mxu0 0.0
    %839 = vmatpush1.xpose.msra.mxu0 0.0
    %840 = vmatprep.subr.mxu0 0.0
    %841 = vmatpush1.xpose.msra.mxu0 0.0
    %842 = vmatprep.subr.mxu0 0.0
    %843 = vmatpush1.xpose.msra.mxu0 0.0
    %844 = vmatprep.subr.mxu0 0.0
    %845 = vmatpush1.xpose.msra.mxu0 0.0
    %846 = vmatprep.subr.mxu0 0.0
    %847 = vmatpush1.xpose.msra.mxu0 0.0
    %848 = vmatprep.subr.mxu0 0.0
    %849 = vmatpush1.xpose.msra.mxu0 0.0
    %850 = vmatprep.subr.mxu0 0.0
    %851 = vmatpush1.xpose.msra.mxu0 0.0
    %852 = vmatprep.subr.mxu0 0.0
    %853 = vmatpush1.xpose.msra.mxu0 0.0
    %854 = vmatprep.subr.mxu0 0.0
    %855 = vmatpush1.xpose.msra.mxu0 0.0
    %856 = vmatprep.subr.mxu0 0.0
    %857 = vmatpush1.xpose.msra.mxu0 0.0
    %858 = vmatprep.subr.mxu0 0.0
    %859 = vmatpush1.xpose.msra.mxu0 0.0
    %860 = vmatprep.subr.mxu0 0.0
    %861 = vmatpush1.xpose.msra.mxu0 0.0
    %862 = vmatprep.subr.mxu0 0.0
    %863 = vmatpush1.xpose.msra.mxu0 0.0
    %864 = vmatprep.subr.mxu0 0.0
    %865 = vmatpush1.xpose.msra.mxu0 0.0
    %866 = vmatprep.subr.mxu0 0.0
    %867 = vmatpush1.xpose.msra.mxu0 0.0
    %868 = vmatprep.subr.mxu0 0.0
    %869 = vmatpush1.xpose.msra.mxu0 0.0
    %870 = vmatprep.subr.mxu0 0.0
    %871 = vmatpush1.xpose.msra.mxu0 0.0
    %872 = vmatprep.subr.mxu0 0.0
    %873 = vmatpush1.xpose.msra.mxu0 0.0
    %874 = vmatprep.subr.mxu0 0.0
    %875 = vmatpush1.xpose.msra.mxu0 0.0
    %876 = vmatprep.subr.mxu0 0.0
    %877 = vmatpush1.xpose.msra.mxu0 0.0
    %878 = vmatprep.subr.mxu0 0.0
    %879 = vmatpush1.xpose.msra.mxu0 0.0
    %880 = vmatprep.subr.mxu0 0.0
    %881 = vmatpush1.xpose.msra.mxu0 0.0
    %882 = vmatprep.subr.mxu0 0.0
    %883 = vmatpush1.xpose.msra.mxu0 0.0
    %884 = vmatprep.subr.mxu0 0.0
    %885 = vmatpush1.xpose.msra.mxu0 0.0
    %886 = vmatprep.subr.mxu0 0.0
    %887 = vmatpush1.xpose.msra.mxu0 0.0
    %888 = vmatprep.subr.mxu0 0.0
    %889 = vmatpush1.xpose.msra.mxu0 0.0
    %890 = vmatprep.subr.mxu0 0.0
    %891 = vmatpush1.xpose.msra.mxu0 0.0
    %892 = vmatprep.mubr.f32.mxu0 0.0
    %893 = vmatmul.mubr.f32.gmra.mrb[0].mxu0 %v820
    %v894 = vpop.f32.mrb[0].mxu0
    %v895 = vadd.f32 0.0, %v894
    %v896 = vpop.f32.mrb[0].mxu0
    %897 = vmatprep.mubr.f32.mxu0 0.0
    %898 = vmatmul.mubr.f32.gmra.mrb[0].mxu0 %v822
    %v899 = vpop.f32.mrb[0].mxu0
    %v900 = vadd.f32 0.0, %v899
    %v901 = vpop.f32.mrb[0].mxu0
    %902 = vdwg.mxu0
    %vm903 = vcmask 130048
    %v904 = vsel %vm903, %v260, -inf
    %905 = vmax.xlane.f32.xlu0 %v904
    %v906 = vpop.xlane.xlu0 %905
    %v907 = vsel %vm903, %v265, -inf
    %908 = vmax.xlane.f32.xlu0 %v907
    %v909 = vpop.xlane.xlu0 %908
    %v910 = vsel %vm903, %v351, -inf
    %911 = vmax.xlane.f32.xlu0 %v910
    %v912 = vpop.xlane.xlu0 %911
    %v913 = vsel %vm903, %v356, -inf
    %914 = vmax.xlane.f32.xlu0 %v913
    %v915 = vpop.xlane.xlu0 %914
    %v916 = vsel %vm903, %v442, -inf
    %917 = vmax.xlane.f32.xlu0 %v916
    %v918 = vpop.xlane.xlu0 %917
    %v919 = vsel %vm903, %v447, -inf
    %920 = vmax.xlane.f32.xlu0 %v919
    %v921 = vpop.xlane.xlu0 %920
    %v922 = vsel %vm903, %v533, -inf
    %923 = vmax.xlane.f32.xlu0 %v922
    %v924 = vpop.xlane.xlu0 %923
    %v925 = vsel %vm903, %v538, -inf
    %926 = vmax.xlane.f32.xlu0 %v925
    %v927 = vpop.xlane.xlu0 %926
    %v928 = vsel %vm903, %v622, -inf
    %929 = vmax.xlane.f32.xlu0 %v928
    %v930 = vpop.xlane.xlu0 %929
    %v931 = vsel %vm903, %v627, -inf
    %932 = vmax.xlane.f32.xlu0 %v931
    %v933 = vpop.xlane.xlu0 %932
    %v934 = vsel %vm903, %v713, -inf
    %935 = vmax.xlane.f32.xlu0 %v934
    %v936 = vpop.xlane.xlu0 %935
    %v937 = vsel %vm903, %v718, -inf
    %938 = vmax.xlane.f32.xlu0 %v937
    %v939 = vpop.xlane.xlu0 %938
    %v940 = vsel %vm903, %v804, -inf
    %941 = vmax.xlane.f32.xlu0 %v940
    %v942 = vpop.xlane.xlu0 %941
    %v943 = vsel %vm903, %v809, -inf
    %944 = vmax.xlane.f32.xlu0 %v943
    %v945 = vpop.xlane.xlu0 %944
    %v946 = vsel %vm903, %v895, -inf
    %947 = vmax.xlane.f32.xlu0 %v946
    %v948 = vpop.xlane.xlu0 %947
    %v949 = vsel %vm903, %v900, -inf
    %950 = vmax.xlane.f32.xlu0 %v949
    %v951 = vpop.xlane.xlu0 %950
    %v952 = vsub.f32 %v260, %v906
    %v953 = vsub.f32 %v265, %v909
    %v954 = vsub.f32 %v351, %v912
    %v955 = vsub.f32 %v356, %v915
    %v956 = vsub.f32 %v442, %v918
    %v957 = vsub.f32 %v447, %v921
    %v958 = vsub.f32 %v533, %v924
    %v959 = vsub.f32 %v538, %v927
    %v960 = vsub.f32 %v622, %v930
    %v961 = vsub.f32 %v627, %v933
    %v962 = vsub.f32 %v713, %v936
    %v963 = vsub.f32 %v718, %v939
    %v964 = vsub.f32 %v804, %v942
    %v965 = vsub.f32 %v809, %v945
    %v966 = vsub.f32 %v895, %v948
    %v967 = vsub.f32 %v900, %v951
    %v968 = vmul.f32 %v952, 1.442695
    %v969 = vpow.pop %v968
    %v970 = vmul.f32 %v953, 1.442695
    %v971 = vpow.pop %v970
    %v972 = vmul.f32 %v954, 1.442695
    %v973 = vpow.pop %v972
    %v974 = vmul.f32 %v955, 1.442695
    %v975 = vpow.pop %v974
    %v976 = vmul.f32 %v956, 1.442695
    %v977 = vpow.pop %v976
    %v978 = vmul.f32 %v957, 1.442695
    %v979 = vpow.pop %v978
    %v980 = vmul.f32 %v958, 1.442695
    %v981 = vpow.pop %v980
    %v982 = vmul.f32 %v959, 1.442695
    %v983 = vpow.pop %v982
    %v984 = vmul.f32 %v960, 1.442695
    %v985 = vpow.pop %v984
    %v986 = vmul.f32 %v961, 1.442695
    %v987 = vpow.pop %v986
    %v988 = vmul.f32 %v962, 1.442695
    %v989 = vpow.pop %v988
    %v990 = vmul.f32 %v963, 1.442695
    %v991 = vpow.pop %v990
    %v992 = vmul.f32 %v964, 1.442695
    %v993 = vpow.pop %v992
    %v994 = vmul.f32 %v965, 1.442695
    %v995 = vpow.pop %v994
    %v996 = vmul.f32 %v966, 1.442695
    %v997 = vpow.pop %v996
    %v998 = vmul.f32 %v967, 1.442695
    %v999 = vpow.pop %v998
    %v1000 = vsel %vm903, %v969, 0.0
    %1001 = vadd.xlane.f32.xlu0 %v1000
    %v1002 = vpop.xlane.xlu0 %1001
    %v1003 = vsel %vm903, %v971, 0.0
    %1004 = vadd.xlane.f32.xlu0 %v1003
    %v1005 = vpop.xlane.xlu0 %1004
    %v1006 = vsel %vm903, %v973, 0.0
    %1007 = vadd.xlane.f32.xlu0 %v1006
    %v1008 = vpop.xlane.xlu0 %1007
    %v1009 = vsel %vm903, %v975, 0.0
    %1010 = vadd.xlane.f32.xlu0 %v1009
    %v1011 = vpop.xlane.xlu0 %1010
    %v1012 = vsel %vm903, %v977, 0.0
    %1013 = vadd.xlane.f32.xlu0 %v1012
    %v1014 = vpop.xlane.xlu0 %1013
    %v1015 = vsel %vm903, %v979, 0.0
    %1016 = vadd.xlane.f32.xlu0 %v1015
    %v1017 = vpop.xlane.xlu0 %1016
    %v1018 = vsel %vm903, %v981, 0.0
    %1019 = vadd.xlane.f32.xlu0 %v1018
    %v1020 = vpop.xlane.xlu0 %1019
    %v1021 = vsel %vm903, %v983, 0.0
    %1022 = vadd.xlane.f32.xlu0 %v1021
    %v1023 = vpop.xlane.xlu0 %1022
    %v1024 = vsel %vm903, %v985, 0.0
    %1025 = vadd.xlane.f32.xlu0 %v1024
    %v1026 = vpop.xlane.xlu0 %1025
    %v1027 = vsel %vm903, %v987, 0.0
    %1028 = vadd.xlane.f32.xlu0 %v1027
    %v1029 = vpop.xlane.xlu0 %1028
    %v1030 = vsel %vm903, %v989, 0.0
    %1031 = vadd.xlane.f32.xlu0 %v1030
    %v1032 = vpop.xlane.xlu0 %1031
    %v1033 = vsel %vm903, %v991, 0.0
    %1034 = vadd.xlane.f32.xlu0 %v1033
    %v1035 = vpop.xlane.xlu0 %1034
    %v1036 = vsel %vm903, %v993, 0.0
    %1037 = vadd.xlane.f32.xlu0 %v1036
    %v1038 = vpop.xlane.xlu0 %1037
    %v1039 = vsel %vm903, %v995, 0.0
    %1040 = vadd.xlane.f32.xlu0 %v1039
    %v1041 = vpop.xlane.xlu0 %1040
    %v1042 = vsel %vm903, %v997, 0.0
    %1043 = vadd.xlane.f32.xlu0 %v1042
    %v1044 = vpop.xlane.xlu0 %1043
    %v1045 = vsel %vm903, %v999, 0.0
    %1046 = vadd.xlane.f32.xlu0 %v1045
    %v1047 = vpop.xlane.xlu0 %1046
    %v1048 = vrcp.pop %v1002
    %v1049 = vrcp.pop %v1005
    %v1050 = vrcp.pop %v1008
    %v1051 = vrcp.pop %v1011
    %v1052 = vrcp.pop %v1014
    %v1053 = vrcp.pop %v1017
    %v1054 = vrcp.pop %v1020
    %v1055 = vrcp.pop %v1023
    %v1056 = vrcp.pop %v1026
    %v1057 = vrcp.pop %v1029
    %v1058 = vrcp.pop %v1032
    %v1059 = vrcp.pop %v1035
    %v1060 = vrcp.pop %v1038
    %v1061 = vrcp.pop %v1041
    %v1062 = vrcp.pop %v1044
    %v1063 = vrcp.pop %v1047
    %v1064 = vmul.f32 %v969, %v1048
    %v1065 = vmul.f32 %v971, %v1049
    %v1066 = vmul.f32 %v973, %v1050
    %v1067 = vmul.f32 %v975, %v1051
    %v1068 = vmul.f32 %v977, %v1052
    %v1069 = vmul.f32 %v979, %v1053
    %v1070 = vmul.f32 %v981, %v1054
    %v1071 = vmul.f32 %v983, %v1055
    %v1072 = vmul.f32 %v985, %v1056
    %v1073 = vmul.f32 %v987, %v1057
    %v1074 = vmul.f32 %v989, %v1058
    %v1075 = vmul.f32 %v991, %v1059
    %v1076 = vmul.f32 %v993, %v1060
    %v1077 = vmul.f32 %v995, %v1061
    %v1078 = vmul.f32 %v997, %v1062
    %v1079 = vmul.f32 %v999, %v1063
    %1080 = vrot.lane.b32.xlu0 %v160, 64
    %v1081 = vpop.permute.xlu0 %1080
    %1082 = vrot.lane.b32.xlu0 %v165, 64
    %v1083 = vpop.permute.xlu0 %1082
    %v1087 = vsel %vm903, %v1064, 0
    %v1090 = vsel %vm903, %v1065, 0
    %1092 = vmatprep.subr.mxu0 0.0
    %1093 = vmatpush1.msra.mxu0 %v1081
    %1094 = vmatprep.subr.mxu0 0.0
    %1095 = vmatpush1.msra.mxu0 %v1083
    %1096 = vmatprep.subr.mxu0 0.0
    %1097 = vmatpush1.msra.mxu0 0.0
    %1098 = vmatprep.subr.mxu0 0.0
    %1099 = vmatpush1.msra.mxu0 0.0
    %1100 = vmatprep.subr.mxu0 0.0
    %1101 = vmatpush1.msra.mxu0 0.0
    %1102 = vmatprep.subr.mxu0 0.0
    %1103 = vmatpush1.msra.mxu0 0.0
    %1104 = vmatprep.subr.mxu0 0.0
    %1105 = vmatpush1.msra.mxu0 0.0
    %1106 = vmatprep.subr.mxu0 0.0
    %1107 = vmatpush1.msra.mxu0 0.0
    %1108 = vmatprep.subr.mxu0 0.0
    %1109 = vmatpush1.msra.mxu0 0.0
    %1110 = vmatprep.subr.mxu0 0.0
    %1111 = vmatpush1.msra.mxu0 0.0
    %1112 = vmatprep.subr.mxu0 0.0
    %1113 = vmatpush1.msra.mxu0 0.0
    %1114 = vmatprep.subr.mxu0 0.0
    %1115 = vmatpush1.msra.mxu0 0.0
    %1116 = vmatprep.subr.mxu0 0.0
    %1117 = vmatpush1.msra.mxu0 0.0
    %1118 = vmatprep.subr.mxu0 0.0
    %1119 = vmatpush1.msra.mxu0 0.0
    %1120 = vmatprep.subr.mxu0 0.0
    %1121 = vmatpush1.msra.mxu0 0.0
    %1122 = vmatprep.subr.mxu0 0.0
    %1123 = vmatpush1.msra.mxu0 0.0
    %1124 = vmatprep.subr.mxu0 0.0
    %1125 = vmatpush1.msra.mxu0 0.0
    %1126 = vmatprep.subr.mxu0 0.0
    %1127 = vmatpush1.msra.mxu0 0.0
    %1128 = vmatprep.subr.mxu0 0.0
    %1129 = vmatpush1.msra.mxu0 0.0
    %1130 = vmatprep.subr.mxu0 0.0
    %1131 = vmatpush1.msra.mxu0 0.0
    %1132 = vmatprep.subr.mxu0 0.0
    %1133 = vmatpush1.msra.mxu0 0.0
    %1134 = vmatprep.subr.mxu0 0.0
    %1135 = vmatpush1.msra.mxu0 0.0
    %1136 = vmatprep.subr.mxu0 0.0
    %1137 = vmatpush1.msra.mxu0 0.0
    %1138 = vmatprep.subr.mxu0 0.0
    %1139 = vmatpush1.msra.mxu0 0.0
    %1140 = vmatprep.subr.mxu0 0.0
    %1141 = vmatpush1.msra.mxu0 0.0
    %1142 = vmatprep.subr.mxu0 0.0
    %1143 = vmatpush1.msra.mxu0 0.0
    %1144 = vmatprep.subr.mxu0 0.0
    %1145 = vmatpush1.msra.mxu0 0.0
    %1146 = vmatprep.subr.mxu0 0.0
    %1147 = vmatpush1.msra.mxu0 0.0
    %1148 = vmatprep.subr.mxu0 0.0
    %1149 = vmatpush1.msra.mxu0 0.0
    %1150 = vmatprep.subr.mxu0 0.0
    %1151 = vmatpush1.msra.mxu0 0.0
    %1152 = vmatprep.subr.mxu0 0.0
    %1153 = vmatpush1.msra.mxu0 0.0
    %1154 = vmatprep.subr.mxu0 0.0
    %1155 = vmatpush1.msra.mxu0 0.0
    %1156 = vmatprep.mubr.f32.mxu0 0.0
    %1157 = vmatmul.mubr.f32.gmra.mrb[0].mxu0 %v1087
    %v1158 = vpop.f32.mrb[0].mxu0
    %v1159 = vadd.f32 0.0, %v1158
    %v1160 = vpop.f32.mrb[0].mxu0
    %1161 = vmatprep.mubr.f32.mxu0 0.0
    %1162 = vmatmul.mubr.f32.gmra.mrb[0].mxu0 %v1090
    %v1163 = vpop.f32.mrb[0].mxu0
    %v1164 = vadd.f32 0.0, %v1163
    %v1165 = vpop.f32.mrb[0].mxu0
    %1166 = vdwg.mxu0
    %1167 = vrot.lane.b32.xlu0 %v160, 56
    %v1168 = vpop.permute.xlu0 %1167
    %1169 = vrot.lane.b32.xlu0 %v165, 56
    %v1170 = vpop.permute.xlu0 %1169
    %v1174 = vsel %vm903, %v1066, 0
    %v1177 = vsel %vm903, %v1067, 0
    %1179 = vmatprep.subr.mxu0 0.0
    %1180 = vmatpush1.msra.mxu0 %v1168
    %1181 = vmatprep.subr.mxu0 0.0
    %1182 = vmatpush1.msra.mxu0 %v1170
    %1183 = vmatprep.subr.mxu0 0.0
    %1184 = vmatpush1.msra.mxu0 0.0
    %1185 = vmatprep.subr.mxu0 0.0
    %1186 = vmatpush1.msra.mxu0 0.0
    %1187 = vmatprep.subr.mxu0 0.0
    %1188 = vmatpush1.msra.mxu0 0.0
    %1189 = vmatprep.subr.mxu0 0.0
    %1190 = vmatpush1.msra.mxu0 0.0
    %1191 = vmatprep.subr.mxu0 0.0
    %1192 = vmatpush1.msra.mxu0 0.0
    %1193 = vmatprep.subr.mxu0 0.0
    %1194 = vmatpush1.msra.mxu0 0.0
    %1195 = vmatprep.subr.mxu0 0.0
    %1196 = vmatpush1.msra.mxu0 0.0
    %1197 = vmatprep.subr.mxu0 0.0
    %1198 = vmatpush1.msra.mxu0 0.0
    %1199 = vmatprep.subr.mxu0 0.0
    %1200 = vmatpush1.msra.mxu0 0.0
    %1201 = vmatprep.subr.mxu0 0.0
    %1202 = vmatpush1.msra.mxu0 0.0
    %1203 = vmatprep.subr.mxu0 0.0
    %1204 = vmatpush1.msra.mxu0 0.0
    %1205 = vmatprep.subr.mxu0 0.0
    %1206 = vmatpush1.msra.mxu0 0.0
    %1207 = vmatprep.subr.mxu0 0.0
    %1208 = vmatpush1.msra.mxu0 0.0
    %1209 = vmatprep.subr.mxu0 0.0
    %1210 = vmatpush1.msra.mxu0 0.0
    %1211 = vmatprep.subr.mxu0 0.0
    %1212 = vmatpush1.msra.mxu0 0.0
    %1213 = vmatprep.subr.mxu0 0.0
    %1214 = vmatpush1.msra.mxu0 0.0
    %1215 = vmatprep.subr.mxu0 0.0
    %1216 = vmatpush1.msra.mxu0 0.0
    %1217 = vmatprep.subr.mxu0 0.0
    %1218 = vmatpush1.msra.mxu0 0.0
    %1219 = vmatprep.subr.mxu0 0.0
    %1220 = vmatpush1.msra.mxu0 0.0
    %1221 = vmatprep.subr.mxu0 0.0
    %1222 = vmatpush1.msra.mxu0 0.0
    %1223 = vmatprep.subr.mxu0 0.0
    %1224 = vmatpush1.msra.mxu0 0.0
    %1225 = vmatprep.subr.mxu0 0.0
    %1226 = vmatpush1.msra.mxu0 0.0
    %1227 = vmatprep.subr.mxu0 0.0
    %1228 = vmatpush1.msra.mxu0 0.0
    %1229 = vmatprep.subr.mxu0 0.0
    %1230 = vmatpush1.msra.mxu0 0.0
    %1231 = vmatprep.subr.mxu0 0.0
    %1232 = vmatpush1.msra.mxu0 0.0
    %1233 = vmatprep.subr.mxu0 0.0
    %1234 = vmatpush1.msra.mxu0 0.0
    %1235 = vmatprep.subr.mxu0 0.0
    %1236 = vmatpush1.msra.mxu0 0.0
    %1237 = vmatprep.subr.mxu0 0.0
    %1238 = vmatpush1.msra.mxu0 0.0
    %1239 = vmatprep.subr.mxu0 0.0
    %1240 = vmatpush1.msra.mxu0 0.0
    %1241 = vmatprep.subr.mxu0 0.0
    %1242 = vmatpush1.msra.mxu0 0.0
    %1243 = vmatprep.mubr.f32.mxu0 0.0
    %1244 = vmatmul.mubr.f32.gmra.mrb[0].mxu0 %v1174
    %v1245 = vpop.f32.mrb[0].mxu0
    %v1246 = vadd.f32 0.0, %v1245
    %v1247 = vpop.f32.mrb[0].mxu0
    %1248 = vmatprep.mubr.f32.mxu0 0.0
    %1249 = vmatmul.mubr.f32.gmra.mrb[0].mxu0 %v1177
    %v1250 = vpop.f32.mrb[0].mxu0
    %v1251 = vadd.f32 0.0, %v1250
    %v1252 = vpop.f32.mrb[0].mxu0
    %1253 = vdwg.mxu0
    %1254 = vrot.lane.b32.xlu0 %v160, 48
    %v1255 = vpop.permute.xlu0 %1254
    %1256 = vrot.lane.b32.xlu0 %v165, 48
    %v1257 = vpop.permute.xlu0 %1256
    %v1261 = vsel %vm903, %v1068, 0
    %v1264 = vsel %vm903, %v1069, 0
    %1266 = vmatprep.subr.mxu0 0.0
    %1267 = vmatpush1.msra.mxu0 %v1255
    %1268 = vmatprep.subr.mxu0 0.0
    %1269 = vmatpush1.msra.mxu0 %v1257
    %1270 = vmatprep.subr.mxu0 0.0
    %1271 = vmatpush1.msra.mxu0 0.0
    %1272 = vmatprep.subr.mxu0 0.0
    %1273 = vmatpush1.msra.mxu0 0.0
    %1274 = vmatprep.subr.mxu0 0.0
    %1275 = vmatpush1.msra.mxu0 0.0
    %1276 = vmatprep.subr.mxu0 0.0
    %1277 = vmatpush1.msra.mxu0 0.0
    %1278 = vmatprep.subr.mxu0 0.0
    %1279 = vmatpush1.msra.mxu0 0.0
    %1280 = vmatprep.subr.mxu0 0.0
    %1281 = vmatpush1.msra.mxu0 0.0
    %1282 = vmatprep.subr.mxu0 0.0
    %1283 = vmatpush1.msra.mxu0 0.0
    %1284 = vmatprep.subr.mxu0 0.0
    %1285 = vmatpush1.msra.mxu0 0.0
    %1286 = vmatprep.subr.mxu0 0.0
    %1287 = vmatpush1.msra.mxu0 0.0
    %1288 = vmatprep.subr.mxu0 0.0
    %1289 = vmatpush1.msra.mxu0 0.0
    %1290 = vmatprep.subr.mxu0 0.0
    %1291 = vmatpush1.msra.mxu0 0.0
    %1292 = vmatprep.subr.mxu0 0.0
    %1293 = vmatpush1.msra.mxu0 0.0
    %1294 = vmatprep.subr.mxu0 0.0
    %1295 = vmatpush1.msra.mxu0 0.0
    %1296 = vmatprep.subr.mxu0 0.0
    %1297 = vmatpush1.msra.mxu0 0.0
    %1298 = vmatprep.subr.mxu0 0.0
    %1299 = vmatpush1.msra.mxu0 0.0
    %1300 = vmatprep.subr.mxu0 0.0
    %1301 = vmatpush1.msra.mxu0 0.0
    %1302 = vmatprep.subr.mxu0 0.0
    %1303 = vmatpush1.msra.mxu0 0.0
    %1304 = vmatprep.subr.mxu0 0.0
    %1305 = vmatpush1.msra.mxu0 0.0
    %1306 = vmatprep.subr.mxu0 0.0
    %1307 = vmatpush1.msra.mxu0 0.0
    %1308 = vmatprep.subr.mxu0 0.0
    %1309 = vmatpush1.msra.mxu0 0.0
    %1310 = vmatprep.subr.mxu0 0.0
    %1311 = vmatpush1.msra.mxu0 0.0
    %1312 = vmatprep.subr.mxu0 0.0
    %1313 = vmatpush1.msra.mxu0 0.0
    %1314 = vmatprep.subr.mxu0 0.0
    %1315 = vmatpush1.msra.mxu0 0.0
    %1316 = vmatprep.subr.mxu0 0.0
    %1317 = vmatpush1.msra.mxu0 0.0
    %1318 = vmatprep.subr.mxu0 0.0
    %1319 = vmatpush1.msra.mxu0 0.0
    %1320 = vmatprep.subr.mxu0 0.0
    %1321 = vmatpush1.msra.mxu0 0.0
    %1322 = vmatprep.subr.mxu0 0.0
    %1323 = vmatpush1.msra.mxu0 0.0
    %1324 = vmatprep.subr.mxu0 0.0
    %1325 = vmatpush1.msra.mxu0 0.0
    %1326 = vmatprep.subr.mxu0 0.0
    %1327 = vmatpush1.msra.mxu0 0.0
    %1328 = vmatprep.subr.mxu0 0.0
    %1329 = vmatpush1.msra.mxu0 0.0
    %1330 = vmatprep.mubr.f32.mxu0 0.0
    %1331 = vmatmul.mubr.f32.gmra.mrb[0].mxu0 %v1261
    %v1332 = vpop.f32.mrb[0].mxu0
    %v1333 = vadd.f32 0.0, %v1332
    %v1334 = vpop.f32.mrb[0].mxu0
    %1335 = vmatprep.mubr.f32.mxu0 0.0
    %1336 = vmatmul.mubr.f32.gmra.mrb[0].mxu0 %v1264
    %v1337 = vpop.f32.mrb[0].mxu0
    %v1338 = vadd.f32 0.0, %v1337
    %v1339 = vpop.f32.mrb[0].mxu0
    %1340 = vdwg.mxu0
    %1341 = vrot.lane.b32.xlu0 %v160, 40
    %v1342 = vpop.permute.xlu0 %1341
    %1343 = vrot.lane.b32.xlu0 %v165, 40
    %v1344 = vpop.permute.xlu0 %1343
    %v1348 = vsel %vm903, %v1070, 0
    %v1351 = vsel %vm903, %v1071, 0
    %1353 = vmatprep.subr.mxu0 0.0
    %1354 = vmatpush1.msra.mxu0 %v1342
    %1355 = vmatprep.subr.mxu0 0.0
    %1356 = vmatpush1.msra.mxu0 %v1344
    %1357 = vmatprep.subr.mxu0 0.0
    %1358 = vmatpush1.msra.mxu0 0.0
    %1359 = vmatprep.subr.mxu0 0.0
    %1360 = vmatpush1.msra.mxu0 0.0
    %1361 = vmatprep.subr.mxu0 0.0
    %1362 = vmatpush1.msra.mxu0 0.0
    %1363 = vmatprep.subr.mxu0 0.0
    %1364 = vmatpush1.msra.mxu0 0.0
    %1365 = vmatprep.subr.mxu0 0.0
    %1366 = vmatpush1.msra.mxu0 0.0
    %1367 = vmatprep.subr.mxu0 0.0
    %1368 = vmatpush1.msra.mxu0 0.0
    %1369 = vmatprep.subr.mxu0 0.0
    %1370 = vmatpush1.msra.mxu0 0.0
    %1371 = vmatprep.subr.mxu0 0.0
    %1372 = vmatpush1.msra.mxu0 0.0
    %1373 = vmatprep.subr.mxu0 0.0
    %1374 = vmatpush1.msra.mxu0 0.0
    %1375 = vmatprep.subr.mxu0 0.0
    %1376 = vmatpush1.msra.mxu0 0.0
    %1377 = vmatprep.subr.mxu0 0.0
    %1378 = vmatpush1.msra.mxu0 0.0
    %1379 = vmatprep.subr.mxu0 0.0
    %1380 = vmatpush1.msra.mxu0 0.0
    %1381 = vmatprep.subr.mxu0 0.0
    %1382 = vmatpush1.msra.mxu0 0.0
    %1383 = vmatprep.subr.mxu0 0.0
    %1384 = vmatpush1.msra.mxu0 0.0
    %1385 = vmatprep.subr.mxu0 0.0
    %1386 = vmatpush1.msra.mxu0 0.0
    %1387 = vmatprep.subr.mxu0 0.0
    %1388 = vmatpush1.msra.mxu0 0.0
    %1389 = vmatprep.subr.mxu0 0.0
    %1390 = vmatpush1.msra.mxu0 0.0
    %1391 = vmatprep.subr.mxu0 0.0
    %1392 = vmatpush1.msra.mxu0 0.0
    %1393 = vmatprep.subr.mxu0 0.0
    %1394 = vmatpush1.msra.mxu0 0.0
    %1395 = vmatprep.subr.mxu0 0.0
    %1396 = vmatpush1.msra.mxu0 0.0
    %1397 = vmatprep.subr.mxu0 0.0
    %1398 = vmatpush1.msra.mxu0 0.0
    %1399 = vmatprep.subr.mxu0 0.0
    %1400 = vmatpush1.msra.mxu0 0.0
    %1401 = vmatprep.subr.mxu0 0.0
    %1402 = vmatpush1.msra.mxu0 0.0
    %1403 = vmatprep.subr.mxu0 0.0
    %1404 = vmatpush1.msra.mxu0 0.0
    %1405 = vmatprep.subr.mxu0 0.0
    %1406 = vmatpush1.msra.mxu0 0.0
    %1407 = vmatprep.subr.mxu0 0.0
    %1408 = vmatpush1.msra.mxu0 0.0
    %1409 = vmatprep.subr.mxu0 0.0
    %1410 = vmatpush1.msra.mxu0 0.0
    %1411 = vmatprep.subr.mxu0 0.0
    %1412 = vmatpush1.msra.mxu0 0.0
    %1413 = vmatprep.subr.mxu0 0.0
    %1414 = vmatpush1.msra.mxu0 0.0
    %1415 = vmatprep.subr.mxu0 0.0
    %1416 = vmatpush1.msra.mxu0 0.0
    %1417 = vmatprep.mubr.f32.mxu0 0.0
    %1418 = vmatmul.mubr.f32.gmra.mrb[0].mxu0 %v1348
    %v1419 = vpop.f32.mrb[0].mxu0
    %v1420 = vadd.f32 0.0, %v1419
    %v1421 = vpop.f32.mrb[0].mxu0
    %1422 = vmatprep.mubr.f32.mxu0 0.0
    %1423 = vmatmul.mubr.f32.gmra.mrb[0].mxu0 %v1351
    %v1424 = vpop.f32.mrb[0].mxu0
    %v1425 = vadd.f32 0.0, %v1424
    %v1426 = vpop.f32.mrb[0].mxu0
    %1427 = vdwg.mxu0
    %1430 = vrot.lane.b32.xlu0 %v1246, 8
    %v1431 = vpop.permute.xlu0 %1430
    %1432 = vrot.lane.b32.xlu0 %v1251, 8
    %v1433 = vpop.permute.xlu0 %1432
    %1438 = vrot.lane.b32.xlu0 %v1333, 16
    %v1439 = vpop.permute.xlu0 %1438
    %1440 = vrot.lane.b32.xlu0 %v1338, 16
    %v1441 = vpop.permute.xlu0 %1440
    %1446 = vrot.lane.b32.xlu0 %v1420, 24
    %v1447 = vpop.permute.xlu0 %1446
    %1448 = vrot.lane.b32.xlu0 %v1425, 24
    %v1449 = vpop.permute.xlu0 %1448
    %v1452 = vsel %vm184, %v1159, %v1431
    %v1453 = vsel %vm184, %v1164, %v1433
    %v1454 = vsel %vm903, %v1452, %v1439
    %v1455 = vsel %vm903, %v1453, %v1441
    %vm1456 = vcmask 195584
    %v1457 = vsel %vm1456, %v1454, %v1447
    %v1458 = vsel %vm1456, %v1455, %v1449
    %1459 = vrot.lane.b32.xlu0 %v170, 64
    %v1460 = vpop.permute.xlu0 %1459
    %1461 = vrot.lane.b32.xlu0 %v175, 64
    %v1462 = vpop.permute.xlu0 %1461
    %v1466 = vsel %vm903, %v1072, 0
    %v1469 = vsel %vm903, %v1073, 0
    %1471 = vmatprep.subr.mxu0 0.0
    %1472 = vmatpush1.msra.mxu0 %v1460
    %1473 = vmatprep.subr.mxu0 0.0
    %1474 = vmatpush1.msra.mxu0 %v1462
    %1475 = vmatprep.subr.mxu0 0.0
    %1476 = vmatpush1.msra.mxu0 0.0
    %1477 = vmatprep.subr.mxu0 0.0
    %1478 = vmatpush1.msra.mxu0 0.0
    %1479 = vmatprep.subr.mxu0 0.0
    %1480 = vmatpush1.msra.mxu0 0.0
    %1481 = vmatprep.subr.mxu0 0.0
    %1482 = vmatpush1.msra.mxu0 0.0
    %1483 = vmatprep.subr.mxu0 0.0
    %1484 = vmatpush1.msra.mxu0 0.0
    %1485 = vmatprep.subr.mxu0 0.0
    %1486 = vmatpush1.msra.mxu0 0.0
    %1487 = vmatprep.subr.mxu0 0.0
    %1488 = vmatpush1.msra.mxu0 0.0
    %1489 = vmatprep.subr.mxu0 0.0
    %1490 = vmatpush1.msra.mxu0 0.0
    %1491 = vmatprep.subr.mxu0 0.0
    %1492 = vmatpush1.msra.mxu0 0.0
    %1493 = vmatprep.subr.mxu0 0.0
    %1494 = vmatpush1.msra.mxu0 0.0
    %1495 = vmatprep.subr.mxu0 0.0
    %1496 = vmatpush1.msra.mxu0 0.0
    %1497 = vmatprep.subr.mxu0 0.0
    %1498 = vmatpush1.msra.mxu0 0.0
    %1499 = vmatprep.subr.mxu0 0.0
    %1500 = vmatpush1.msra.mxu0 0.0
    %1501 = vmatprep.subr.mxu0 0.0
    %1502 = vmatpush1.msra.mxu0 0.0
    %1503 = vmatprep.subr.mxu0 0.0
    %1504 = vmatpush1.msra.mxu0 0.0
    %1505 = vmatprep.subr.mxu0 0.0
    %1506 = vmatpush1.msra.mxu0 0.0
    %1507 = vmatprep.subr.mxu0 0.0
    %1508 = vmatpush1.msra.mxu0 0.0
    %1509 = vmatprep.subr.mxu0 0.0
    %1510 = vmatpush1.msra.mxu0 0.0
    %1511 = vmatprep.subr.mxu0 0.0
    %1512 = vmatpush1.msra.mxu0 0.0
    %1513 = vmatprep.subr.mxu0 0.0
    %1514 = vmatpush1.msra.mxu0 0.0
    %1515 = vmatprep.subr.mxu0 0.0
    %1516 = vmatpush1.msra.mxu0 0.0
    %1517 = vmatprep.subr.mxu0 0.0
    %1518 = vmatpush1.msra.mxu0 0.0
    %1519 = vmatprep.subr.mxu0 0.0
    %1520 = vmatpush1.msra.mxu0 0.0
    %1521 = vmatprep.subr.mxu0 0.0
    %1522 = vmatpush1.msra.mxu0 0.0
    %1523 = vmatprep.subr.mxu0 0.0
    %1524 = vmatpush1.msra.mxu0 0.0
    %1525 = vmatprep.subr.mxu0 0.0
    %1526 = vmatpush1.msra.mxu0 0.0
    %1527 = vmatprep.subr.mxu0 0.0
    %1528 = vmatpush1.msra.mxu0 0.0
    %1529 = vmatprep.subr.mxu0 0.0
    %1530 = vmatpush1.msra.mxu0 0.0
    %1531 = vmatprep.subr.mxu0 0.0
    %1532 = vmatpush1.msra.mxu0 0.0
    %1533 = vmatprep.subr.mxu0 0.0
    %1534 = vmatpush1.msra.mxu0 0.0
    %1535 = vmatprep.mubr.f32.mxu0 0.0
    %1536 = vmatmul.mubr.f32.gmra.mrb[0].mxu0 %v1466
    %v1537 = vpop.f32.mrb[0].mxu0
    %v1538 = vadd.f32 0.0, %v1537
    %v1539 = vpop.f32.mrb[0].mxu0
    %1540 = vmatprep.mubr.f32.mxu0 0.0
    %1541 = vmatmul.mubr.f32.gmra.mrb[0].mxu0 %v1469
    %v1542 = vpop.f32.mrb[0].mxu0
    %v1543 = vadd.f32 0.0, %v1542
    %v1544 = vpop.f32.mrb[0].mxu0
    %1545 = vdwg.mxu0
    %1546 = vrot.lane.b32.xlu0 %v170, 56
    %v1547 = vpop.permute.xlu0 %1546
    %1548 = vrot.lane.b32.xlu0 %v175, 56
    %v1549 = vpop.permute.xlu0 %1548
    %v1553 = vsel %vm903, %v1074, 0
    %v1556 = vsel %vm903, %v1075, 0
    %1558 = vmatprep.subr.mxu0 0.0
    %1559 = vmatpush1.msra.mxu0 %v1547
    %1560 = vmatprep.subr.mxu0 0.0
    %1561 = vmatpush1.msra.mxu0 %v1549
    %1562 = vmatprep.subr.mxu0 0.0
    %1563 = vmatpush1.msra.mxu0 0.0
    %1564 = vmatprep.subr.mxu0 0.0
    %1565 = vmatpush1.msra.mxu0 0.0
    %1566 = vmatprep.subr.mxu0 0.0
    %1567 = vmatpush1.msra.mxu0 0.0
    %1568 = vmatprep.subr.mxu0 0.0
    %1569 = vmatpush1.msra.mxu0 0.0
    %1570 = vmatprep.subr.mxu0 0.0
    %1571 = vmatpush1.msra.mxu0 0.0
    %1572 = vmatprep.subr.mxu0 0.0
    %1573 = vmatpush1.msra.mxu0 0.0
    %1574 = vmatprep.subr.mxu0 0.0
    %1575 = vmatpush1.msra.mxu0 0.0
    %1576 = vmatprep.subr.mxu0 0.0
    %1577 = vmatpush1.msra.mxu0 0.0
    %1578 = vmatprep.subr.mxu0 0.0
    %1579 = vmatpush1.msra.mxu0 0.0
    %1580 = vmatprep.subr.mxu0 0.0
    %1581 = vmatpush1.msra.mxu0 0.0
    %1582 = vmatprep.subr.mxu0 0.0
    %1583 = vmatpush1.msra.mxu0 0.0
    %1584 = vmatprep.subr.mxu0 0.0
    %1585 = vmatpush1.msra.mxu0 0.0
    %1586 = vmatprep.subr.mxu0 0.0
    %1587 = vmatpush1.msra.mxu0 0.0
    %1588 = vmatprep.subr.mxu0 0.0
    %1589 = vmatpush1.msra.mxu0 0.0
    %1590 = vmatprep.subr.mxu0 0.0
    %1591 = vmatpush1.msra.mxu0 0.0
    %1592 = vmatprep.subr.mxu0 0.0
    %1593 = vmatpush1.msra.mxu0 0.0
    %1594 = vmatprep.subr.mxu0 0.0
    %1595 = vmatpush1.msra.mxu0 0.0
    %1596 = vmatprep.subr.mxu0 0.0
    %1597 = vmatpush1.msra.mxu0 0.0
    %1598 = vmatprep.subr.mxu0 0.0
    %1599 = vmatpush1.msra.mxu0 0.0
    %1600 = vmatprep.subr.mxu0 0.0
    %1601 = vmatpush1.msra.mxu0 0.0
    %1602 = vmatprep.subr.mxu0 0.0
    %1603 = vmatpush1.msra.mxu0 0.0
    %1604 = vmatprep.subr.mxu0 0.0
    %1605 = vmatpush1.msra.mxu0 0.0
    %1606 = vmatprep.subr.mxu0 0.0
    %1607 = vmatpush1.msra.mxu0 0.0
    %1608 = vmatprep.subr.mxu0 0.0
    %1609 = vmatpush1.msra.mxu0 0.0
    %1610 = vmatprep.subr.mxu0 0.0
    %1611 = vmatpush1.msra.mxu0 0.0
    %1612 = vmatprep.subr.mxu0 0.0
    %1613 = vmatpush1.msra.mxu0 0.0
    %1614 = vmatprep.subr.mxu0 0.0
    %1615 = vmatpush1.msra.mxu0 0.0
    %1616 = vmatprep.subr.mxu0 0.0
    %1617 = vmatpush1.msra.mxu0 0.0
    %1618 = vmatprep.subr.mxu0 0.0
    %1619 = vmatpush1.msra.mxu0 0.0
    %1620 = vmatprep.subr.mxu0 0.0
    %1621 = vmatpush1.msra.mxu0 0.0
    %1622 = vmatprep.mubr.f32.mxu0 0.0
    %1623 = vmatmul.mubr.f32.gmra.mrb[0].mxu0 %v1553
    %v1624 = vpop.f32.mrb[0].mxu0
    %v1625 = vadd.f32 0.0, %v1624
    %v1626 = vpop.f32.mrb[0].mxu0
    %1627 = vmatprep.mubr.f32.mxu0 0.0
    %1628 = vmatmul.mubr.f32.gmra.mrb[0].mxu0 %v1556
    %v1629 = vpop.f32.mrb[0].mxu0
    %v1630 = vadd.f32 0.0, %v1629
    %v1631 = vpop.f32.mrb[0].mxu0
    %1632 = vdwg.mxu0
    %1633 = vrot.lane.b32.xlu0 %v170, 48
    %v1634 = vpop.permute.xlu0 %1633
    %1635 = vrot.lane.b32.xlu0 %v175, 48
    %v1636 = vpop.permute.xlu0 %1635
    %v1640 = vsel %vm903, %v1076, 0
    %v1643 = vsel %vm903, %v1077, 0
    %1645 = vmatprep.subr.mxu0 0.0
    %1646 = vmatpush1.msra.mxu0 %v1634
    %1647 = vmatprep.subr.mxu0 0.0
    %1648 = vmatpush1.msra.mxu0 %v1636
    %1649 = vmatprep.subr.mxu0 0.0
    %1650 = vmatpush1.msra.mxu0 0.0
    %1651 = vmatprep.subr.mxu0 0.0
    %1652 = vmatpush1.msra.mxu0 0.0
    %1653 = vmatprep.subr.mxu0 0.0
    %1654 = vmatpush1.msra.mxu0 0.0
    %1655 = vmatprep.subr.mxu0 0.0
    %1656 = vmatpush1.msra.mxu0 0.0
    %1657 = vmatprep.subr.mxu0 0.0
    %1658 = vmatpush1.msra.mxu0 0.0
    %1659 = vmatprep.subr.mxu0 0.0
    %1660 = vmatpush1.msra.mxu0 0.0
    %1661 = vmatprep.subr.mxu0 0.0
    %1662 = vmatpush1.msra.mxu0 0.0
    %1663 = vmatprep.subr.mxu0 0.0
    %1664 = vmatpush1.msra.mxu0 0.0
    %1665 = vmatprep.subr.mxu0 0.0
    %1666 = vmatpush1.msra.mxu0 0.0
    %1667 = vmatprep.subr.mxu0 0.0
    %1668 = vmatpush1.msra.mxu0 0.0
    %1669 = vmatprep.subr.mxu0 0.0
    %1670 = vmatpush1.msra.mxu0 0.0
    %1671 = vmatprep.subr.mxu0 0.0
    %1672 = vmatpush1.msra.mxu0 0.0
    %1673 = vmatprep.subr.mxu0 0.0
    %1674 = vmatpush1.msra.mxu0 0.0
    %1675 = vmatprep.subr.mxu0 0.0
    %1676 = vmatpush1.msra.mxu0 0.0
    %1677 = vmatprep.subr.mxu0 0.0
    %1678 = vmatpush1.msra.mxu0 0.0
    %1679 = vmatprep.subr.mxu0 0.0
    %1680 = vmatpush1.msra.mxu0 0.0
    %1681 = vmatprep.subr.mxu0 0.0
    %1682 = vmatpush1.msra.mxu0 0.0
    %1683 = vmatprep.subr.mxu0 0.0
    %1684 = vmatpush1.msra.mxu0 0.0
    %1685 = vmatprep.subr.mxu0 0.0
    %1686 = vmatpush1.msra.mxu0 0.0
    %1687 = vmatprep.subr.mxu0 0.0
    %1688 = vmatpush1.msra.mxu0 0.0
    %1689 = vmatprep.subr.mxu0 0.0
    %1690 = vmatpush1.msra.mxu0 0.0
    %1691 = vmatprep.subr.mxu0 0.0
    %1692 = vmatpush1.msra.mxu0 0.0
    %1693 = vmatprep.subr.mxu0 0.0
    %1694 = vmatpush1.msra.mxu0 0.0
    %1695 = vmatprep.subr.mxu0 0.0
    %1696 = vmatpush1.msra.mxu0 0.0
    %1697 = vmatprep.subr.mxu0 0.0
    %1698 = vmatpush1.msra.mxu0 0.0
    %1699 = vmatprep.subr.mxu0 0.0
    %1700 = vmatpush1.msra.mxu0 0.0
    %1701 = vmatprep.subr.mxu0 0.0
    %1702 = vmatpush1.msra.mxu0 0.0
    %1703 = vmatprep.subr.mxu0 0.0
    %1704 = vmatpush1.msra.mxu0 0.0
    %1705 = vmatprep.subr.mxu0 0.0
    %1706 = vmatpush1.msra.mxu0 0.0
    %1707 = vmatprep.subr.mxu0 0.0
    %1708 = vmatpush1.msra.mxu0 0.0
    %1709 = vmatprep.mubr.f32.mxu0 0.0
    %1710 = vmatmul.mubr.f32.gmra.mrb[0].mxu0 %v1640
    %v1711 = vpop.f32.mrb[0].mxu0
    %v1712 = vadd.f32 0.0, %v1711
    %v1713 = vpop.f32.mrb[0].mxu0
    %1714 = vmatprep.mubr.f32.mxu0 0.0
    %1715 = vmatmul.mubr.f32.gmra.mrb[0].mxu0 %v1643
    %v1716 = vpop.f32.mrb[0].mxu0
    %v1717 = vadd.f32 0.0, %v1716
    %v1718 = vpop.f32.mrb[0].mxu0
    %1719 = vdwg.mxu0
    %1720 = vrot.lane.b32.xlu0 %v170, 40
    %v1721 = vpop.permute.xlu0 %1720
    %1722 = vrot.lane.b32.xlu0 %v175, 40
    %v1723 = vpop.permute.xlu0 %1722
    %v1727 = vsel %vm903, %v1078, 0
    %v1730 = vsel %vm903, %v1079, 0
    %1732 = vmatprep.subr.mxu0 0.0
    %1733 = vmatpush1.msra.mxu0 %v1721
    %1734 = vmatprep.subr.mxu0 0.0
    %1735 = vmatpush1.msra.mxu0 %v1723
    %1736 = vmatprep.subr.mxu0 0.0
    %1737 = vmatpush1.msra.mxu0 0.0
    %1738 = vmatprep.subr.mxu0 0.0
    %1739 = vmatpush1.msra.mxu0 0.0
    %1740 = vmatprep.subr.mxu0 0.0
    %1741 = vmatpush1.msra.mxu0 0.0
    %1742 = vmatprep.subr.mxu0 0.0
    %1743 = vmatpush1.msra.mxu0 0.0
    %1744 = vmatprep.subr.mxu0 0.0
    %1745 = vmatpush1.msra.mxu0 0.0
    %1746 = vmatprep.subr.mxu0 0.0
    %1747 = vmatpush1.msra.mxu0 0.0
    %1748 = vmatprep.subr.mxu0 0.0
    %1749 = vmatpush1.msra.mxu0 0.0
    %1750 = vmatprep.subr.mxu0 0.0
    %1751 = vmatpush1.msra.mxu0 0.0
    %1752 = vmatprep.subr.mxu0 0.0
    %1753 = vmatpush1.msra.mxu0 0.0
    %1754 = vmatprep.subr.mxu0 0.0
    %1755 = vmatpush1.msra.mxu0 0.0
    %1756 = vmatprep.subr.mxu0 0.0
    %1757 = vmatpush1.msra.mxu0 0.0
    %1758 = vmatprep.subr.mxu0 0.0
    %1759 = vmatpush1.msra.mxu0 0.0
    %1760 = vmatprep.subr.mxu0 0.0
    %1761 = vmatpush1.msra.mxu0 0.0
    %1762 = vmatprep.subr.mxu0 0.0
    %1763 = vmatpush1.msra.mxu0 0.0
    %1764 = vmatprep.subr.mxu0 0.0
    %1765 = vmatpush1.msra.mxu0 0.0
    %1766 = vmatprep.subr.mxu0 0.0
    %1767 = vmatpush1.msra.mxu0 0.0
    %1768 = vmatprep.subr.mxu0 0.0
    %1769 = vmatpush1.msra.mxu0 0.0
    %1770 = vmatprep.subr.mxu0 0.0
    %1771 = vmatpush1.msra.mxu0 0.0
    %1772 = vmatprep.subr.mxu0 0.0
    %1773 = vmatpush1.msra.mxu0 0.0
    %1774 = vmatprep.subr.mxu0 0.0
    %1775 = vmatpush1.msra.mxu0 0.0
    %1776 = vmatprep.subr.mxu0 0.0
    %1777 = vmatpush1.msra.mxu0 0.0
    %1778 = vmatprep.subr.mxu0 0.0
    %1779 = vmatpush1.msra.mxu0 0.0
    %1780 = vmatprep.subr.mxu0 0.0
    %1781 = vmatpush1.msra.mxu0 0.0
    %1782 = vmatprep.subr.mxu0 0.0
    %1783 = vmatpush1.msra.mxu0 0.0
    %1784 = vmatprep.subr.mxu0 0.0
    %1785 = vmatpush1.msra.mxu0 0.0
    %1786 = vmatprep.subr.mxu0 0.0
    %1787 = vmatpush1.msra.mxu0 0.0
    %1788 = vmatprep.subr.mxu0 0.0
    %1789 = vmatpush1.msra.mxu0 0.0
    %1790 = vmatprep.subr.mxu0 0.0
    %1791 = vmatpush1.msra.mxu0 0.0
    %1792 = vmatprep.subr.mxu0 0.0
    %1793 = vmatpush1.msra.mxu0 0.0
    %1794 = vmatprep.subr.mxu0 0.0
    %1795 = vmatpush1.msra.mxu0 0.0
    %1796 = vmatprep.mubr.f32.mxu0 0.0
    %1797 = vmatmul.mubr.f32.gmra.mrb[0].mxu0 %v1727
    %v1798 = vpop.f32.mrb[0].mxu0
    %v1799 = vadd.f32 0.0, %v1798
    %v1800 = vpop.f32.mrb[0].mxu0
    %1801 = vmatprep.mubr.f32.mxu0 0.0
    %1802 = vmatmul.mubr.f32.gmra.mrb[0].mxu0 %v1730
    %v1803 = vpop.f32.mrb[0].mxu0
    %v1804 = vadd.f32 0.0, %v1803
    %v1805 = vpop.f32.mrb[0].mxu0
    %1806 = vdwg.mxu0
    %1809 = vrot.lane.b32.xlu0 %v1625, 8
    %v1810 = vpop.permute.xlu0 %1809
    %1811 = vrot.lane.b32.xlu0 %v1630, 8
    %v1812 = vpop.permute.xlu0 %1811
    %1817 = vrot.lane.b32.xlu0 %v1712, 16
    %v1818 = vpop.permute.xlu0 %1817
    %1819 = vrot.lane.b32.xlu0 %v1717, 16
    %v1820 = vpop.permute.xlu0 %1819
    %1825 = vrot.lane.b32.xlu0 %v1799, 24
    %v1826 = vpop.permute.xlu0 %1825
    %1827 = vrot.lane.b32.xlu0 %v1804, 24
    %v1828 = vpop.permute.xlu0 %1827
    %v1831 = vsel %vm184, %v1538, %v1810
    %v1832 = vsel %vm184, %v1543, %v1812
    %v1833 = vsel %vm903, %v1831, %v1818
    %v1834 = vsel %vm903, %v1832, %v1820
    %v1835 = vsel %vm1456, %v1833, %v1826
    %v1836 = vsel %vm1456, %v1834, %v1828
    %v1837 = vld [vmem:[%s2] sm:$0xff]
    %v1838 = vld [vmem:[%s2 + $0x8] sm:$0xff]
    %v1839 = vld [vmem:[%s2 + $0x10] sm:$0xff]
    %v1840 = vld [vmem:[%s2 + $0x18] sm:$0xff]
    %v1842 = vsel %vm80, %v1457, 0
    %v1845 = vsel %vm80, %v1458, 0
    %v1848 = vsel %vm80, %v1835, 0
    %v1851 = vsel %vm80, %v1836, 0
    %1853 = vmatprep.subr.mxu0 0.0
    %1854 = vmatpush1.msra.mxu0 %v1837
    %1855 = vmatprep.subr.mxu0 0.0
    %1856 = vmatpush1.msra.mxu0 %v1838
    %1857 = vmatprep.subr.mxu0 0.0
    %1858 = vmatpush1.msra.mxu0 %v1839
    %1859 = vmatprep.subr.mxu0 0.0
    %1860 = vmatpush1.msra.mxu0 %v1840
    %1861 = vmatprep.subr.mxu0 0.0
    %1862 = vmatpush1.msra.mxu0 0.0
    %1863 = vmatprep.subr.mxu0 0.0
    %1864 = vmatpush1.msra.mxu0 0.0
    %1865 = vmatprep.subr.mxu0 0.0
    %1866 = vmatpush1.msra.mxu0 0.0
    %1867 = vmatprep.subr.mxu0 0.0
    %1868 = vmatpush1.msra.mxu0 0.0
    %1869 = vmatprep.subr.mxu0 0.0
    %1870 = vmatpush1.msra.mxu0 0.0
    %1871 = vmatprep.subr.mxu0 0.0
    %1872 = vmatpush1.msra.mxu0 0.0
    %1873 = vmatprep.subr.mxu0 0.0
    %1874 = vmatpush1.msra.mxu0 0.0
    %1875 = vmatprep.subr.mxu0 0.0
    %1876 = vmatpush1.msra.mxu0 0.0
    %1877 = vmatprep.subr.mxu0 0.0
    %1878 = vmatpush1.msra.mxu0 0.0
    %1879 = vmatprep.subr.mxu0 0.0
    %1880 = vmatpush1.msra.mxu0 0.0
    %1881 = vmatprep.subr.mxu0 0.0
    %1882 = vmatpush1.msra.mxu0 0.0
    %1883 = vmatprep.subr.mxu0 0.0
    %1884 = vmatpush1.msra.mxu0 0.0
    %1885 = vmatprep.subr.mxu0 0.0
    %1886 = vmatpush1.msra.mxu0 0.0
    %1887 = vmatprep.subr.mxu0 0.0
    %1888 = vmatpush1.msra.mxu0 0.0
    %1889 = vmatprep.subr.mxu0 0.0
    %1890 = vmatpush1.msra.mxu0 0.0
    %1891 = vmatprep.subr.mxu0 0.0
    %1892 = vmatpush1.msra.mxu0 0.0
    %1893 = vmatprep.subr.mxu0 0.0
    %1894 = vmatpush1.msra.mxu0 0.0
    %1895 = vmatprep.subr.mxu0 0.0
    %1896 = vmatpush1.msra.mxu0 0.0
    %1897 = vmatprep.subr.mxu0 0.0
    %1898 = vmatpush1.msra.mxu0 0.0
    %1899 = vmatprep.subr.mxu0 0.0
    %1900 = vmatpush1.msra.mxu0 0.0
    %1901 = vmatprep.subr.mxu0 0.0
    %1902 = vmatpush1.msra.mxu0 0.0
    %1903 = vmatprep.subr.mxu0 0.0
    %1904 = vmatpush1.msra.mxu0 0.0
    %1905 = vmatprep.subr.mxu0 0.0
    %1906 = vmatpush1.msra.mxu0 0.0
    %1907 = vmatprep.subr.mxu0 0.0
    %1908 = vmatpush1.msra.mxu0 0.0
    %1909 = vmatprep.subr.mxu0 0.0
    %1910 = vmatpush1.msra.mxu0 0.0
    %1911 = vmatprep.subr.mxu0 0.0
    %1912 = vmatpush1.msra.mxu0 0.0
    %1913 = vmatprep.subr.mxu0 0.0
    %1914 = vmatpush1.msra.mxu0 0.0
    %1915 = vmatprep.subr.mxu0 0.0
    %1916 = vmatpush1.msra.mxu0 0.0
    %1917 = vmatprep.mubr.f32.mxu0 0.0
    %1918 = vmatmul.mubr.f32.gmra.mrb[0].mxu0 %v1842
    %v1919 = vpop.f32.mrb[0].mxu0
    %v1920 = vadd.f32 0.0, %v1919
    %v1921 = vpop.f32.mrb[0].mxu0
    %1922 = vmatprep.mubr.f32.mxu0 0.0
    %1923 = vmatmul.mubr.f32.gmra.mrb[0].mxu0 %v1845
    %v1924 = vpop.f32.mrb[0].mxu0
    %v1925 = vadd.f32 0.0, %v1924
    %v1926 = vpop.f32.mrb[0].mxu0
    %1927 = vmatprep.mubr.f32.mxu0 0.0
    %1928 = vmatmul.mubr.f32.gmra.mrb[0].mxu0 %v1848
    %v1929 = vpop.f32.mrb[0].mxu0
    %v1930 = vadd.f32 0.0, %v1929
    %v1931 = vpop.f32.mrb[0].mxu0
    %1932 = vmatprep.mubr.f32.mxu0 0.0
    %1933 = vmatmul.mubr.f32.gmra.mrb[0].mxu0 %v1851
    %v1934 = vpop.f32.mrb[0].mxu0
    %v1935 = vadd.f32 0.0, %v1934
    %v1936 = vpop.f32.mrb[0].mxu0
    %1937 = vdwg.mxu0
    %1938 = vrot.lane.b32.xlu0 %v1066, 16
    %v1939 = vpop.permute.xlu0 %1938
    %1940 = vrot.lane.b32.xlu0 %v1067, 16
    %v1941 = vpop.permute.xlu0 %1940
    %1944 = vrot.lane.b32.xlu0 %v1068, 32
    %v1945 = vpop.permute.xlu0 %1944
    %1946 = vrot.lane.b32.xlu0 %v1069, 32
    %v1947 = vpop.permute.xlu0 %1946
    %1950 = vrot.lane.b32.xlu0 %v1070, 48
    %v1951 = vpop.permute.xlu0 %1950
    %1952 = vrot.lane.b32.xlu0 %v1071, 48
    %v1953 = vpop.permute.xlu0 %1952
    %v1956 = vsel %vm903, %v1064, %v1939
    %v1957 = vsel %vm903, %v1065, %v1941
    %v1958 = vsel %vm80, %v1956, %v1945
    %v1959 = vsel %vm80, %v1957, %v1947
    %vm1960 = vcmask 392192
    %v1961 = vsel %vm1960, %v1958, %v1951
    %v1962 = vsel %vm1960, %v1959, %v1953
    %1963 = vrot.lane.b32.xlu0 %v1074, 16
    %v1964 = vpop.permute.xlu0 %1963
    %1965 = vrot.lane.b32.xlu0 %v1075, 16
    %v1966 = vpop.permute.xlu0 %1965
    %1969 = vrot.lane.b32.xlu0 %v1076, 32
    %v1970 = vpop.permute.xlu0 %1969
    %1971 = vrot.lane.b32.xlu0 %v1077, 32
    %v1972 = vpop.permute.xlu0 %1971
    %1975 = vrot.lane.b32.xlu0 %v1078, 48
    %v1976 = vpop.permute.xlu0 %1975
    %1977 = vrot.lane.b32.xlu0 %v1079, 48
    %v1978 = vpop.permute.xlu0 %1977
    %v1981 = vsel %vm903, %v1072, %v1964
    %v1982 = vsel %vm903, %v1073, %v1966
    %v1983 = vsel %vm80, %v1981, %v1970
    %v1984 = vsel %vm80, %v1982, %v1972
    %v1985 = vsel %vm1960, %v1983, %v1976
    %v1986 = vsel %vm1960, %v1984, %v1978
    %v1987 = vadd.f32 %v68, %v1920
    %v1988 = vadd.f32 %v69, %v1925
    %v1989 = vadd.f32 %v70, %v1930
    %v1990 = vadd.f32 %v71, %v1935
    %v1992 = vsel %vm80, %v72, 0
    %v1995 = vsel %vm80, %v73, 0
    %v1998 = vsel %vm80, %v74, 0
    %v2001 = vsel %vm80, %v75, 0
    %2003 = vmatprep.subr.mxu0 0.0
    %2004 = vmatpush1.msra.mxu0 %v1987
    %2005 = vmatprep.subr.mxu0 0.0
    %2006 = vmatpush1.msra.mxu0 %v1988
    %2007 = vmatprep.subr.mxu0 0.0
    %2008 = vmatpush1.msra.mxu0 %v1989
    %2009 = vmatprep.subr.mxu0 0.0
    %2010 = vmatpush1.msra.mxu0 %v1990
    %2011 = vmatprep.subr.mxu0 0.0
    %2012 = vmatpush1.msra.mxu0 0.0
    %2013 = vmatprep.subr.mxu0 0.0
    %2014 = vmatpush1.msra.mxu0 0.0
    %2015 = vmatprep.subr.mxu0 0.0
    %2016 = vmatpush1.msra.mxu0 0.0
    %2017 = vmatprep.subr.mxu0 0.0
    %2018 = vmatpush1.msra.mxu0 0.0
    %2019 = vmatprep.subr.mxu0 0.0
    %2020 = vmatpush1.msra.mxu0 0.0
    %2021 = vmatprep.subr.mxu0 0.0
    %2022 = vmatpush1.msra.mxu0 0.0
    %2023 = vmatprep.subr.mxu0 0.0
    %2024 = vmatpush1.msra.mxu0 0.0
    %2025 = vmatprep.subr.mxu0 0.0
    %2026 = vmatpush1.msra.mxu0 0.0
    %2027 = vmatprep.subr.mxu0 0.0
    %2028 = vmatpush1.msra.mxu0 0.0
    %2029 = vmatprep.subr.mxu0 0.0
    %2030 = vmatpush1.msra.mxu0 0.0
    %2031 = vmatprep.subr.mxu0 0.0
    %2032 = vmatpush1.msra.mxu0 0.0
    %2033 = vmatprep.subr.mxu0 0.0
    %2034 = vmatpush1.msra.mxu0 0.0
    %2035 = vmatprep.subr.mxu0 0.0
    %2036 = vmatpush1.msra.mxu0 0.0
    %2037 = vmatprep.subr.mxu0 0.0
    %2038 = vmatpush1.msra.mxu0 0.0
    %2039 = vmatprep.subr.mxu0 0.0
    %2040 = vmatpush1.msra.mxu0 0.0
    %2041 = vmatprep.subr.mxu0 0.0
    %2042 = vmatpush1.msra.mxu0 0.0
    %2043 = vmatprep.subr.mxu0 0.0
    %2044 = vmatpush1.msra.mxu0 0.0
    %2045 = vmatprep.subr.mxu0 0.0
    %2046 = vmatpush1.msra.mxu0 0.0
    %2047 = vmatprep.subr.mxu0 0.0
    %2048 = vmatpush1.msra.mxu0 0.0
    %2049 = vmatprep.subr.mxu0 0.0
    %2050 = vmatpush1.msra.mxu0 0.0
    %2051 = vmatprep.subr.mxu0 0.0
    %2052 = vmatpush1.msra.mxu0 0.0
    %2053 = vmatprep.subr.mxu0 0.0
    %2054 = vmatpush1.msra.mxu0 0.0
    %2055 = vmatprep.subr.mxu0 0.0
    %2056 = vmatpush1.msra.mxu0 0.0
    %2057 = vmatprep.subr.mxu0 0.0
    %2058 = vmatpush1.msra.mxu0 0.0
    %2059 = vmatprep.subr.mxu0 0.0
    %2060 = vmatpush1.msra.mxu0 0.0
    %2061 = vmatprep.subr.mxu0 0.0
    %2062 = vmatpush1.msra.mxu0 0.0
    %2063 = vmatprep.subr.mxu0 0.0
    %2064 = vmatpush1.msra.mxu0 0.0
    %2065 = vmatprep.subr.mxu0 0.0
    %2066 = vmatpush1.msra.mxu0 0.0
    %2067 = vmatprep.mubr.f32.mxu0 0.0
    %2068 = vmatmul.mubr.f32.gmra.mrb[0].mxu0 %v1992
    %v2069 = vpop.f32.mrb[0].mxu0
    %v2070 = vadd.f32 0.0, %v2069
    %v2071 = vpop.f32.mrb[0].mxu0
    %2072 = vmatprep.mubr.f32.mxu0 0.0
    %2073 = vmatmul.mubr.f32.gmra.mrb[0].mxu0 %v1995
    %v2074 = vpop.f32.mrb[0].mxu0
    %v2075 = vadd.f32 0.0, %v2074
    %v2076 = vpop.f32.mrb[0].mxu0
    %2077 = vmatprep.mubr.f32.mxu0 0.0
    %2078 = vmatmul.mubr.f32.gmra.mrb[0].mxu0 %v1998
    %v2079 = vpop.f32.mrb[0].mxu0
    %v2080 = vadd.f32 0.0, %v2079
    %v2081 = vpop.f32.mrb[0].mxu0
    %2082 = vmatprep.mubr.f32.mxu0 0.0
    %2083 = vmatmul.mubr.f32.gmra.mrb[0].mxu0 %v2001
    %v2084 = vpop.f32.mrb[0].mxu0
    %v2085 = vadd.f32 0.0, %v2084
    %v2086 = vpop.f32.mrb[0].mxu0
    %2087 = vdwg.mxu0
    %v2088 = vsub.f32 %v1987, %v2070
    %v2089 = vsub.f32 %v1988, %v2075
    %v2090 = vsub.f32 %v1989, %v2080
    %v2091 = vsub.f32 %v1990, %v2085
    %v2092 = vld [vmem:[#allocation6] sm:$0xff]
    %v2093 = vld [vmem:[#allocation6 + $0x8] sm:$0xff]
    %v2094 = vld [vmem:[#allocation6 + $0x10] sm:$0xff]
    %v2095 = vld [vmem:[#allocation6 + $0x18] sm:$0xff]
    %v2097 = vsel %vm80, %v2088, 0
    %v2100 = vsel %vm80, %v2089, 0
    %v2103 = vsel %vm80, %v2090, 0
    %v2106 = vsel %vm80, %v2091, 0
    %2108 = vmatprep.subr.mxu0 0.0
    %2109 = vmatpush1.msra.mxu0 %v2092
    %2110 = vmatprep.subr.mxu0 0.0
    %2111 = vmatpush1.msra.mxu0 %v2093
    %2112 = vmatprep.subr.mxu0 0.0
    %2113 = vmatpush1.msra.mxu0 %v2094
    %2114 = vmatprep.subr.mxu0 0.0
    %2115 = vmatpush1.msra.mxu0 %v2095
    %2116 = vmatprep.subr.mxu0 0.0
    %2117 = vmatpush1.msra.mxu0 0.0
    %2118 = vmatprep.subr.mxu0 0.0
    %2119 = vmatpush1.msra.mxu0 0.0
    %2120 = vmatprep.subr.mxu0 0.0
    %2121 = vmatpush1.msra.mxu0 0.0
    %2122 = vmatprep.subr.mxu0 0.0
    %2123 = vmatpush1.msra.mxu0 0.0
    %2124 = vmatprep.subr.mxu0 0.0
    %2125 = vmatpush1.msra.mxu0 0.0
    %2126 = vmatprep.subr.mxu0 0.0
    %2127 = vmatpush1.msra.mxu0 0.0
    %2128 = vmatprep.subr.mxu0 0.0
    %2129 = vmatpush1.msra.mxu0 0.0
    %2130 = vmatprep.subr.mxu0 0.0
    %2131 = vmatpush1.msra.mxu0 0.0
    %2132 = vmatprep.subr.mxu0 0.0
    %2133 = vmatpush1.msra.mxu0 0.0
    %2134 = vmatprep.subr.mxu0 0.0
    %2135 = vmatpush1.msra.mxu0 0.0
    %2136 = vmatprep.subr.mxu0 0.0
    %2137 = vmatpush1.msra.mxu0 0.0
    %2138 = vmatprep.subr.mxu0 0.0
    %2139 = vmatpush1.msra.mxu0 0.0
    %2140 = vmatprep.subr.mxu0 0.0
    %2141 = vmatpush1.msra.mxu0 0.0
    %2142 = vmatprep.subr.mxu0 0.0
    %2143 = vmatpush1.msra.mxu0 0.0
    %2144 = vmatprep.subr.mxu0 0.0
    %2145 = vmatpush1.msra.mxu0 0.0
    %2146 = vmatprep.subr.mxu0 0.0
    %2147 = vmatpush1.msra.mxu0 0.0
    %2148 = vmatprep.subr.mxu0 0.0
    %2149 = vmatpush1.msra.mxu0 0.0
    %2150 = vmatprep.subr.mxu0 0.0
    %2151 = vmatpush1.msra.mxu0 0.0
    %2152 = vmatprep.subr.mxu0 0.0
    %2153 = vmatpush1.msra.mxu0 0.0
    %2154 = vmatprep.subr.mxu0 0.0
    %2155 = vmatpush1.msra.mxu0 0.0
    %2156 = vmatprep.subr.mxu0 0.0
    %2157 = vmatpush1.msra.mxu0 0.0
    %2158 = vmatprep.subr.mxu0 0.0
    %2159 = vmatpush1.msra.mxu0 0.0
    %2160 = vmatprep.subr.mxu0 0.0
    %2161 = vmatpush1.msra.mxu0 0.0
    %2162 = vmatprep.subr.mxu0 0.0
    %2163 = vmatpush1.msra.mxu0 0.0
    %2164 = vmatprep.subr.mxu0 0.0
    %2165 = vmatpush1.msra.mxu0 0.0
    %2166 = vmatprep.subr.mxu0 0.0
    %2167 = vmatpush1.msra.mxu0 0.0
    %2168 = vmatprep.subr.mxu0 0.0
    %2169 = vmatpush1.msra.mxu0 0.0
    %2170 = vmatprep.subr.mxu0 0.0
    %2171 = vmatpush1.msra.mxu0 0.0
    %2172 = vmatprep.mubr.f32.mxu0 0.0
    %2173 = vmatmul.mubr.f32.gmra.mrb[0].mxu0 %v2097
    %v2174 = vpop.f32.mrb[0].mxu0
    %v2175 = vadd.f32 0.0, %v2174
    %v2176 = vpop.f32.mrb[0].mxu0
    %2177 = vmatprep.mubr.f32.mxu0 0.0
    %2178 = vmatmul.mubr.f32.gmra.mrb[0].mxu0 %v2100
    %v2179 = vpop.f32.mrb[0].mxu0
    %v2180 = vadd.f32 0.0, %v2179
    %v2181 = vpop.f32.mrb[0].mxu0
    %2182 = vmatprep.mubr.f32.mxu0 0.0
    %2183 = vmatmul.mubr.f32.gmra.mrb[0].mxu0 %v2103
    %v2184 = vpop.f32.mrb[0].mxu0
    %v2185 = vadd.f32 0.0, %v2184
    %v2186 = vpop.f32.mrb[0].mxu0
    %2187 = vmatprep.mubr.f32.mxu0 0.0
    %2188 = vmatmul.mubr.f32.gmra.mrb[0].mxu0 %v2106
    %v2189 = vpop.f32.mrb[0].mxu0
    %v2190 = vadd.f32 0.0, %v2189
    %v2191 = vpop.f32.mrb[0].mxu0
    %2192 = vdwg.mxu0
    %v2193 = vmax.f32 %v2175, 0.0
    %v2194 = vmax.f32 %v2180, 0.0
    %v2195 = vmax.f32 %v2185, 0.0
    %v2196 = vmax.f32 %v2190, 0.0
    %v2197 = vld [vmem:[%s5] sm:$0xff]
    %v2198 = vld [vmem:[%s5 + $0x8] sm:$0xff]
    %v2199 = vld [vmem:[%s5 + $0x10] sm:$0xff]
    %v2200 = vld [vmem:[%s5 + $0x18] sm:$0xff]
    %v2201 = vld [vmem:[%s5 + $0x20] sm:$0xff]
    %v2202 = vld [vmem:[%s5 + $0x28] sm:$0xff]
    %v2203 = vld [vmem:[%s5 + $0x30] sm:$0xff]
    %v2204 = vld [vmem:[%s5 + $0x38] sm:$0xff]
    %vm2205 = vcmask 523264
    %v2207 = vsel %vm2205, %v2193, 0
    %v2210 = vsel %vm2205, %v2194, 0
    %v2213 = vsel %vm2205, %v2195, 0
    %v2216 = vsel %vm2205, %v2196, 0
    %2218 = vmatprep.subr.mxu0 0.0
    %2219 = vmatpush1.msra.mxu0 %v2197
    %2220 = vmatprep.subr.mxu0 0.0
    %2221 = vmatpush1.msra.mxu0 %v2198
    %2222 = vmatprep.subr.mxu0 0.0
    %2223 = vmatpush1.msra.mxu0 %v2199
    %2224 = vmatprep.subr.mxu0 0.0
    %2225 = vmatpush1.msra.mxu0 %v2200
    %2226 = vmatprep.subr.mxu0 0.0
    %2227 = vmatpush1.msra.mxu0 %v2201
    %2228 = vmatprep.subr.mxu0 0.0
    %2229 = vmatpush1.msra.mxu0 %v2202
    %2230 = vmatprep.subr.mxu0 0.0
    %2231 = vmatpush1.msra.mxu0 %v2203
    %2232 = vmatprep.subr.mxu0 0.0
    %2233 = vmatpush1.msra.mxu0 %v2204
    %2234 = vmatprep.subr.mxu0 0.0
    %2235 = vmatpush1.msra.mxu0 0.0
    %2236 = vmatprep.subr.mxu0 0.0
    %2237 = vmatpush1.msra.mxu0 0.0
    %2238 = vmatprep.subr.mxu0 0.0
    %2239 = vmatpush1.msra.mxu0 0.0
    %2240 = vmatprep.subr.mxu0 0.0
    %2241 = vmatpush1.msra.mxu0 0.0
    %2242 = vmatprep.subr.mxu0 0.0
    %2243 = vmatpush1.msra.mxu0 0.0
    %2244 = vmatprep.subr.mxu0 0.0
    %2245 = vmatpush1.msra.mxu0 0.0
    %2246 = vmatprep.subr.mxu0 0.0
    %2247 = vmatpush1.msra.mxu0 0.0
    %2248 = vmatprep.subr.mxu0 0.0
    %2249 = vmatpush1.msra.mxu0 0.0
    %2250 = vmatprep.subr.mxu0 0.0
    %2251 = vmatpush1.msra.mxu0 0.0
    %2252 = vmatprep.subr.mxu0 0.0
    %2253 = vmatpush1.msra.mxu0 0.0
    %2254 = vmatprep.subr.mxu0 0.0
    %2255 = vmatpush1.msra.mxu0 0.0
    %2256 = vmatprep.subr.mxu0 0.0
    %2257 = vmatpush1.msra.mxu0 0.0
    %2258 = vmatprep.subr.mxu0 0.0
    %2259 = vmatpush1.msra.mxu0 0.0
    %2260 = vmatprep.subr.mxu0 0.0
    %2261 = vmatpush1.msra.mxu0 0.0
    %2262 = vmatprep.subr.mxu0 0.0
    %2263 = vmatpush1.msra.mxu0 0.0
    %2264 = vmatprep.subr.mxu0 0.0
    %2265 = vmatpush1.msra.mxu0 0.0
    %2266 = vmatprep.subr.mxu0 0.0
    %2267 = vmatpush1.msra.mxu0 0.0
    %2268 = vmatprep.subr.mxu0 0.0
    %2269 = vmatpush1.msra.mxu0 0.0
    %2270 = vmatprep.subr.mxu0 0.0
    %2271 = vmatpush1.msra.mxu0 0.0
    %2272 = vmatprep.subr.mxu0 0.0
    %2273 = vmatpush1.msra.mxu0 0.0
    %2274 = vmatprep.subr.mxu0 0.0
    %2275 = vmatpush1.msra.mxu0 0.0
    %2276 = vmatprep.subr.mxu0 0.0
    %2277 = vmatpush1.msra.mxu0 0.0
    %2278 = vmatprep.subr.mxu0 0.0
    %2279 = vmatpush1.msra.mxu0 0.0
    %2280 = vmatprep.subr.mxu0 0.0
    %2281 = vmatpush1.msra.mxu0 0.0
    %2282 = vmatprep.mubr.f32.mxu0 0.0
    %2283 = vmatmul.mubr.f32.gmra.mrb[0].mxu0 %v2207
    %v2284 = vpop.f32.mrb[0].mxu0
    %v2285 = vadd.f32 0.0, %v2284
    %v2286 = vpop.f32.mrb[0].mxu0
    %2287 = vmatprep.mubr.f32.mxu0 0.0
    %2288 = vmatmul.mubr.f32.gmra.mrb[0].mxu0 %v2210
    %v2289 = vpop.f32.mrb[0].mxu0
    %v2290 = vadd.f32 0.0, %v2289
    %v2291 = vpop.f32.mrb[0].mxu0
    %2292 = vmatprep.mubr.f32.mxu0 0.0
    %2293 = vmatmul.mubr.f32.gmra.mrb[0].mxu0 %v2213
    %v2294 = vpop.f32.mrb[0].mxu0
    %v2295 = vadd.f32 0.0, %v2294
    %v2296 = vpop.f32.mrb[0].mxu0
    %2297 = vmatprep.mubr.f32.mxu0 0.0
    %2298 = vmatmul.mubr.f32.gmra.mrb[0].mxu0 %v2216
    %v2299 = vpop.f32.mrb[0].mxu0
    %v2300 = vadd.f32 0.0, %v2299
    %v2301 = vpop.f32.mrb[0].mxu0
    %2302 = vdwg.mxu0
    %v2303 = vadd.f32 %v2088, %v2285
    %v2304 = vadd.f32 %v2089, %v2290
    %v2305 = vadd.f32 %v2090, %v2295
    %v2306 = vadd.f32 %v2091, %v2300
    %2307 = vmatprep.subr.mxu0 0.0
    %2308 = vmatpush1.msra.mxu0 %v2303
    %2309 = vmatprep.subr.mxu0 0.0
    %2310 = vmatpush1.msra.mxu0 %v2304
    %2311 = vmatprep.subr.mxu0 0.0
    %2312 = vmatpush1.msra.mxu0 %v2305
    %2313 = vmatprep.subr.mxu0 0.0
    %2314 = vmatpush1.msra.mxu0 %v2306
    %2315 = vmatprep.subr.mxu0 0.0
    %2316 = vmatpush1.msra.mxu0 0.0
    %2317 = vmatprep.subr.mxu0 0.0
    %2318 = vmatpush1.msra.mxu0 0.0
    %2319 = vmatprep.subr.mxu0 0.0
    %2320 = vmatpush1.msra.mxu0 0.0
    %2321 = vmatprep.subr.mxu0 0.0
    %2322 = vmatpush1.msra.mxu0 0.0
    %2323 = vmatprep.subr.mxu0 0.0
    %2324 = vmatpush1.msra.mxu0 0.0
    %2325 = vmatprep.subr.mxu0 0.0
    %2326 = vmatpush1.msra.mxu0 0.0
    %2327 = vmatprep.subr.mxu0 0.0
    %2328 = vmatpush1.msra.mxu0 0.0
    %2329 = vmatprep.subr.mxu0 0.0
    %2330 = vmatpush1.msra.mxu0 0.0
    %2331 = vmatprep.subr.mxu0 0.0
    %2332 = vmatpush1.msra.mxu0 0.0
    %2333 = vmatprep.subr.mxu0 0.0
    %2334 = vmatpush1.msra.mxu0 0.0
    %2335 = vmatprep.subr.mxu0 0.0
    %2336 = vmatpush1.msra.mxu0 0.0
    %2337 = vmatprep.subr.mxu0 0.0
    %2338 = vmatpush1.msra.mxu0 0.0
    %2339 = vmatprep.subr.mxu0 0.0
    %2340 = vmatpush1.msra.mxu0 0.0
    %2341 = vmatprep.subr.mxu0 0.0
    %2342 = vmatpush1.msra.mxu0 0.0
    %2343 = vmatprep.subr.mxu0 0.0
    %2344 = vmatpush1.msra.mxu0 0.0
    %2345 = vmatprep.subr.mxu0 0.0
    %2346 = vmatpush1.msra.mxu0 0.0
    %2347 = vmatprep.subr.mxu0 0.0
    %2348 = vmatpush1.msra.mxu0 0.0
    %2349 = vmatprep.subr.mxu0 0.0
    %2350 = vmatpush1.msra.mxu0 0.0
    %2351 = vmatprep.subr.mxu0 0.0
    %2352 = vmatpush1.msra.mxu0 0.0
    %2353 = vmatprep.subr.mxu0 0.0
    %2354 = vmatpush1.msra.mxu0 0.0
    %2355 = vmatprep.subr.mxu0 0.0
    %2356 = vmatpush1.msra.mxu0 0.0
    %2357 = vmatprep.subr.mxu0 0.0
    %2358 = vmatpush1.msra.mxu0 0.0
    %2359 = vmatprep.subr.mxu0 0.0
    %2360 = vmatpush1.msra.mxu0 0.0
    %2361 = vmatprep.subr.mxu0 0.0
    %2362 = vmatpush1.msra.mxu0 0.0
    %2363 = vmatprep.subr.mxu0 0.0
    %2364 = vmatpush1.msra.mxu0 0.0
    %2365 = vmatprep.subr.mxu0 0.0
    %2366 = vmatpush1.msra.mxu0 0.0
    %2367 = vmatprep.subr.mxu0 0.0
    %2368 = vmatpush1.msra.mxu0 0.0
    %2369 = vmatprep.subr.mxu0 0.0
    %2370 = vmatpush1.msra.mxu0 0.0
    %2371 = vmatprep.mubr.f32.mxu0 0.0
    %2372 = vmatmul.mubr.f32.gmra.mrb[0].mxu0 %v1992
    %v2373 = vpop.f32.mrb[0].mxu0
    %v2374 = vadd.f32 0.0, %v2373
    %v2375 = vpop.f32.mrb[0].mxu0
    %2376 = vmatprep.mubr.f32.mxu0 0.0
    %2377 = vmatmul.mubr.f32.gmra.mrb[0].mxu0 %v1995
    %v2378 = vpop.f32.mrb[0].mxu0
    %v2379 = vadd.f32 0.0, %v2378
    %v2380 = vpop.f32.mrb[0].mxu0
    %2381 = vmatprep.mubr.f32.mxu0 0.0
    %2382 = vmatmul.mubr.f32.gmra.mrb[0].mxu0 %v1998
    %v2383 = vpop.f32.mrb[0].mxu0
    %v2384 = vadd.f32 0.0, %v2383
    %v2385 = vpop.f32.mrb[0].mxu0
    %2386 = vmatprep.mubr.f32.mxu0 0.0
    %2387 = vmatmul.mubr.f32.gmra.mrb[0].mxu0 %v2001
    %v2388 = vpop.f32.mrb[0].mxu0
    %v2389 = vadd.f32 0.0, %v2388
    %v2390 = vpop.f32.mrb[0].mxu0
    %2391 = vdwg.mxu0
    %v2392 = vsub.f32 %v2303, %v2374
    %v2393 = vsub.f32 %v2304, %v2379
    %v2394 = vsub.f32 %v2305, %v2384
    %v2395 = vsub.f32 %v2306, %v2389
    %s2396 = sld [smem:[#allocation8]]
    %s2397 = sld [smem:[#allocation8 + $0x1]]
    %v2398 = vstv %s2396
    %v2399 = vmul.f32 %v2070, %v2398
    %v2400 = vmul.f32 %v2075, %v2398
    %v2401 = vmul.f32 %v2080, %v2398
    %v2402 = vmul.f32 %v2085, %v2398
    %v2403 = vstv %s2397
    %v2404 = vadd.f32 %v2399, %v2403
    %v2405 = vadd.f32 %v2400, %v2403
    %v2406 = vadd.f32 %v2401, %v2403
    %v2407 = vadd.f32 %v2402, %v2403
    %v2408 = vsub.f32 0.0, %v2404
    %v2409 = vsub.f32 0.0, %v2405
    %v2410 = vsub.f32 0.0, %v2406
    %v2411 = vsub.f32 0.0, %v2407
    %v2412 = vmul.f32 %v2408, 1.442695
    %v2413 = vpow.pop %v2412
    %v2414 = vmul.f32 %v2409, 1.442695
    %v2415 = vpow.pop %v2414
    %v2416 = vmul.f32 %v2410, 1.442695
    %v2417 = vpow.pop %v2416
    %v2418 = vmul.f32 %v2411, 1.442695
    %v2419 = vpow.pop %v2418
    %v2420 = vadd.f32 %v2413, 1.0
    %v2421 = vadd.f32 %v2415, 1.0
    %v2422 = vadd.f32 %v2417, 1.0
    %v2423 = vadd.f32 %v2419, 1.0
    %v2424 = vrcp.pop %v2420
    %v2425 = vmul.f32 1.0, %v2424
    %v2426 = vrcp.pop %v2421
    %v2427 = vmul.f32 1.0, %v2426
    %v2428 = vrcp.pop %v2422
    %v2429 = vmul.f32 1.0, %v2428
    %v2430 = vrcp.pop %v2423
    %v2431 = vmul.f32 1.0, %v2430
    %v2432 = vsub.f32 %v2374, %v2070
    %v2433 = vsub.f32 %v2379, %v2075
    %v2434 = vsub.f32 %v2384, %v2080
    %v2435 = vsub.f32 %v2389, %v2085
    %v2436 = vmul.f32 %v2432, %v2425
    %v2437 = vmul.f32 %v2433, %v2427
    %v2438 = vmul.f32 %v2434, %v2429
    %v2439 = vmul.f32 %v2435, %v2431
    %v2440 = vadd.f32 %v2070, %v2436
    %v2441 = vadd.f32 %v2075, %v2437
    %v2442 = vadd.f32 %v2080, %v2438
    %v2443 = vadd.f32 %v2085, %v2439
    %2448 = vrot.lane.b32.xlu0 %v2440, 32
    %v2449 = vpop.permute.xlu0 %2448
    %2450 = vrot.lane.b32.xlu0 %v2441, 32
    %v2451 = vpop.permute.xlu0 %2450
    %2452 = vrot.lane.b32.xlu0 %v2442, 32
    %v2453 = vpop.permute.xlu0 %2452
    %2454 = vrot.lane.b32.xlu0 %v2443, 32
    %v2455 = vpop.permute.xlu0 %2454
    %2464 = vrot.lane.b32.xlu0 %v1961, 64
    %v2465 = vpop.permute.xlu0 %2464
    %2466 = vrot.lane.b32.xlu0 %v1962, 64
    %v2467 = vpop.permute.xlu0 %2466
    %2468 = vrot.lane.b32.xlu0 %v1985, 64
    %v2469 = vpop.permute.xlu0 %2468
    %2470 = vrot.lane.b32.xlu0 %v1986, 64
    %v2471 = vpop.permute.xlu0 %2470
    %v2476 = vsel %vm80, %v2392, %v2449
    %v2477 = vsel %vm80, %v2393, %v2451
    %v2478 = vsel %vm80, %v2394, %v2453
    %v2479 = vsel %vm80, %v2395, %v2455
    %v2480 = vsel %vm2205, %v2476, %v2465
    %v2481 = vsel %vm2205, %v2477, %v2467
    %v2482 = vsel %vm2205, %v2478, %v2469
    %v2483 = vsel %vm2205, %v2479, %v2471
    %2484 = vst [vmem:[#allocation9] sm:$0xff] %v2480
    %2485 = vst [vmem:[#allocation9 + $0x8] sm:$0xff] %v2481
    %2486 = vst [vmem:[#allocation9 + $0x10] sm:$0xff] %v2482
    %2487 = vst [vmem:[#allocation9 + $0x18] sm:$0xff] %v2483
    // Predicated region
    $region42: #{tpu_custom_call.1} parent=1 // pred_check
      _
    $region43: #{tpu_custom_call.1} parent=1 // pred_check_branch
      %2489 = sbr.rel (0) target = $region45
    $region44: #{tpu_custom_call.1} parent=1 // pred_region
      %s2491 = ssub.s32 512, 512
      %2492 = vsyncadd [#allocation4], %s2491
      %s2493 = sshll.u32 [#allocation9], 4
      %s2494 = int_to_ptr.vmem [resolvable:$true] %s2493
      %2499 = dma.vmem_to_hbm [thread:$0]  %s2494, 512, %s7, [#allocation4], 128, 128, 8
    $region45: #{tpu_custom_call.1} parent=1 // pred_fallthru
      _
    // Predicated region
    $region46: #{tpu_custom_call.1} parent=1 // pred_check
      _
    $region47: #{tpu_custom_call.1} parent=1 // pred_check_branch
      %2501 = sbr.rel (0) target = $region49
    $region48: #{tpu_custom_call.1} parent=1 // pred_region
      %2502 = dma.done [#allocation4], 512
    $region49: #{tpu_custom_call.1} parent=1 // pred_fallthru
      _
    %2503 = vsyncpa [#allocation3], 1
    %2504 = vsyncpa [#allocation7], 1
    %2505 = vsyncpa [#allocation4], 1
    %2506 = vsyncpa [#allocation5], 1

</llo_original>
